<compile_context>
chip_gen: v6e
topology: v6e:2x2x1
jax: 0.10.0
libtpu: 0.0.40
codegen_flags: <defaults>
</compile_context>

<pallas_src>
import functools

import jax
import jax.numpy as jnp
from jax.experimental import pallas as pl
from jax.experimental.pallas import tpu as pltpu


# ---------------------------------------------------------------------------
# Fused kernel
# ---------------------------------------------------------------------------
def _decoder_kernel(exo_ref, hf_ref, ht_ref, adjt_ref,
                    w_exo_ref, w_h_ref, b_in_ref,
                    w_g3_ref, b_gc_ref,
                    w_og_ref, w_oh_ref, b_out_ref,
                    w_ro_ref, w_rh_ref, b_read_ref,
                    alpha_ref,
                    y_read_ref, y_repr_ref,
                    *, n_support, batch_chunk, d_model, conv_dtype):
    """One grid step = (batch chunk, dest-node tile). Channels on sublanes,
    nodes on lanes, so every store below is full-lane-width (lane dense).

    exo_ref  : [Bc, c_exo, N]   cat([x, m, u]) channels, ALL source nodes
    hf_ref   : [Bc, d,     N]   h, ALL source nodes (for lin_in)
    ht_ref   : [Bc, d,    nt]   h, this dest-node tile (for lin_out/read_out)
    adjt_ref : [S,  N,    nt]   adj^T columns for this dest-node tile (streamed)
    y_read   : [Bc, d_out, nt]
    y_repr   : [Bc, 2*d,   nt]
    """
    alpha = alpha_ref[0]                                   # PReLU weight (SMEM)
    for b in range(batch_chunk):
        # lin_in over ALL source nodes of this batch (split weights fold the
        # channel concat):  x1[c, v] = (W_in^T @ cat([x,m,u,h]))[c, v] + b_in[c]
        x1 = (jnp.dot(w_exo_ref[...], exo_ref[b], preferred_element_type=jnp.float32)
              + jnp.dot(w_h_ref[...], hf_ref[b], preferred_element_type=jnp.float32)
              + b_in_ref[...])                             # [d, N]

        # SpatialConvOrderK (order=1, include_self=False):
        #   gc[:, tile] = sum_s (W_s^T @ x1) @ A_s^T[:, tile]
        # (per-support channel mix commutes with the node aggregation; the
        #  streamed operands optionally run in bf16 with f32 accumulation)
        gc = None
        for s in range(n_support):
            z_s = jnp.dot(w_g3_ref[s], x1,
                          preferred_element_type=jnp.float32).astype(conv_dtype)
            part = jnp.dot(z_s, adjt_ref[s], preferred_element_type=jnp.float32)
            gc = part if gc is None else gc + part
        gc = gc + b_gc_ref[...]                            # [d, nt]

        h_t = ht_ref[b]                                    # [d, nt]

        # lin_out(cat([gc, h])) with the concat folded into split weights, PReLU
        o = (jnp.dot(w_og_ref[...], gc, preferred_element_type=jnp.float32)
             + jnp.dot(w_oh_ref[...], h_t, preferred_element_type=jnp.float32)
             + b_out_ref[...])
        o = jnp.where(o > 0.0, o, alpha * o)

        # representation output cat([o, h], channel).  The channel axis is the
        # sublane axis here, so both stores are full-lane-width slabs.
        y_repr_ref[b, :d_model, :] = o
        y_repr_ref[b, d_model:, :] = h_t

        # read_out(cat([o, h])) with split weights
        y_read_ref[b] = (jnp.dot(w_ro_ref[...], o, preferred_element_type=jnp.float32)
                         + jnp.dot(w_rh_ref[...], h_t, preferred_element_type=jnp.float32)
                         + b_read_ref[...])


# ---------------------------------------------------------------------------
# Wrapper
# ---------------------------------------------------------------------------
def _vmem_cap_bytes():
    try:
        return int(pltpu.get_tpu_info().vmem_capacity_bytes)
    except Exception:
        return 64 * 1024 * 1024          # assume the smallest (v7x per-core) VMEM


def make_spatial_decoder_params(key, d_in, d_model, d_out, support_len):
    ks = jax.random.split(key, 8)
    s = 0.1
    return dict(
        w_in=jax.random.normal(ks[0], (d_in, d_model), jnp.float32) * s,
        b_in=jax.random.normal(ks[1], (1, d_model), jnp.float32) * s,
        w_gc=jax.random.normal(ks[2], (support_len * d_model, d_model), jnp.float32) * s,
        b_gc=jax.random.normal(ks[3], (1, d_model), jnp.float32) * s,
        w_out=jax.random.normal(ks[4], (2 * d_model, d_model), jnp.float32) * s,
        b_out=jax.random.normal(ks[5], (1, d_model), jnp.float32) * s,
        alpha=jnp.full((1, 1), 0.25, jnp.float32),       # nn.PReLU() default init
        w_read=jax.random.normal(ks[6], (2 * d_model, d_out), jnp.float32) * s,
        b_read=jax.random.normal(ks[7], (1, d_out), jnp.float32) * s,
    )


def spatial_decoder_forward(x, m, h, u, adj, params, *, d_model,
                            conv_dtype=jnp.float32, node_tile=None,
                            batch_chunk=None):
    """x, m, u: [B, c, N] (NCW);  h: [B, d_model, N];  adj: [S, N, N]."""
    f32 = jnp.float32
    d = d_model
    exo = jnp.concatenate([x, m] if u is None else [x, m, u], axis=1).astype(f32)
    B, c_exo, N = exo.shape
    S = adj.shape[0]
    d_out = params["w_read"].shape[1]
    h = h.astype(f32)

    # ---- parameter layout plumbing (tiny, once per call) -----------------
    w_in = params["w_in"]                                  # [c_exo + d, d]
    w_exo_t = jnp.transpose(w_in[:c_exo]).astype(f32)      # [d, c_exo]
    w_h_t = jnp.transpose(w_in[c_exo:]).astype(f32)        # [d, d]
    b_in = params["b_in"].reshape(d, 1).astype(f32)
    w_g3_t = jnp.transpose(params["w_gc"].reshape(S, d, d), (0, 2, 1)).astype(f32)
    b_gc = params["b_gc"].reshape(d, 1).astype(f32)
    w_og_t = jnp.transpose(params["w_out"][:d]).astype(f32)
    w_oh_t = jnp.transpose(params["w_out"][d:]).astype(f32)
    b_out = params["b_out"].reshape(d, 1).astype(f32)
    w_ro_t = jnp.transpose(params["w_read"][:d]).astype(f32)
    w_rh_t = jnp.transpose(params["w_read"][d:]).astype(f32)
    b_read = params["b_read"].reshape(d_out, 1).astype(f32)
    alpha = params["alpha"].reshape(1).astype(f32)         # -> SMEM scalar

    # adjacency transposed once so the kernel contracts over source nodes with a
    # plain matmul (could be cached by the caller; adj is static across steps).
    adj_t = jnp.transpose(adj, (0, 2, 1)).astype(conv_dtype)   # adj_t[s, v, w] = adj[s, w, v]

    # ---- tile sizes, gated only by VMEM (not MXU width) -------------------
    conv_bytes = jnp.dtype(conv_dtype).itemsize
    budget = (3 * _vmem_cap_bytes()) // 4                  # headroom: v7x has 64 MiB/core

    def vmem_est(bc, nt):
        per_chunk = 2 * bc * (c_exo + d) * N * 4           # exo + h full-node blocks (x2 buf)
        streamed = 2 * (S * N * nt * conv_bytes            # adj^T dest-node tile
                        + bc * d * nt * 4                  # h dest-node tile
                        + bc * (2 * d + d_out) * nt * 4)   # outputs
        temps = 6 * d * N * 4                              # x1 / z_s live values
        return per_chunk + streamed + temps + (4 << 20)

    nt = node_tile if node_tile is not None else (N if N <= 512 else 512)
    bc = batch_chunk if batch_chunk is not None else B
    while vmem_est(bc, nt) > budget:
        if nt > 256:
            nt = 256                                       # multiples of 128 only
        elif nt > 128:
            nt = 128
        elif bc > 1:
            bc = max(1, bc // 2)
        else:
            # TODO(synk): tile the source-node (contraction) axis for very large N.
            break

    grid = (pl.cdiv(B, bc), pl.cdiv(N, nt))
    kernel = functools.partial(_decoder_kernel, n_support=S, batch_chunk=bc,
                               d_model=d, conv_dtype=conv_dtype)

    y_read, y_repr = pl.pallas_call(
        kernel,
        out_shape=(jax.ShapeDtypeStruct((B, d_out, N), f32),
                   jax.ShapeDtypeStruct((B, 2 * d, N), f32)),
        grid=grid,
        in_specs=[
            pl.BlockSpec((bc, c_exo, N), lambda j, i: (j, 0, 0)),   # cat([x,m,u])
            pl.BlockSpec((bc, d, N), lambda j, i: (j, 0, 0)),       # h, all source nodes
            pl.BlockSpec((bc, d, nt), lambda j, i: (j, 0, i)),      # h, dest-node tile
            pl.BlockSpec((S, N, nt), lambda j, i: (0, 0, i)),       # adj^T tile (streamed)
            pl.BlockSpec((d, c_exo), lambda j, i: (0, 0)),          # W_in[:c_exo]^T
            pl.BlockSpec((d, d), lambda j, i: (0, 0)),              # W_in[c_exo:]^T
            pl.BlockSpec((d, 1), lambda j, i: (0, 0)),              # b_in
            pl.BlockSpec((S, d, d), lambda j, i: (0, 0, 0)),        # W_s^T (graph conv mix)
            pl.BlockSpec((d, 1), lambda j, i: (0, 0)),              # b_gc
            pl.BlockSpec((d, d), lambda j, i: (0, 0)),              # W_out[:d]^T
            pl.BlockSpec((d, d), lambda j, i: (0, 0)),              # W_out[d:]^T
            pl.BlockSpec((d, 1), lambda j, i: (0, 0)),              # b_out
            pl.BlockSpec((d_out, d), lambda j, i: (0, 0)),          # W_read[:d]^T
            pl.BlockSpec((d_out, d), lambda j, i: (0, 0)),          # W_read[d:]^T
            pl.BlockSpec((d_out, 1), lambda j, i: (0, 0)),          # b_read
            pl.BlockSpec(memory_space=pltpu.MemorySpace.SMEM),      # PReLU alpha
        ],
        out_specs=(pl.BlockSpec((bc, d_out, nt), lambda j, i: (j, 0, i)),
                   pl.BlockSpec((bc, 2 * d, nt), lambda j, i: (j, 0, i))),
        compiler_params=pltpu.CompilerParams(
            dimension_semantics=("parallel", "parallel"),
            vmem_limit_bytes=int(min(max(vmem_est(bc, nt), 8 << 20), budget))),
    )(exo, h, h, adj_t, w_exo_t, w_h_t, b_in, w_g3_t, b_gc,
      w_og_t, w_oh_t, b_out, w_ro_t, w_rh_t, b_read, alpha)

    # matches the PyTorch module's (read_out(out), out), already in NCW layout
    return y_read, y_repr


# ---------------------------------------------------------------------------
# Pure-JAX reference (correctness check)
# ---------------------------------------------------------------------------
def spatial_decoder_reference(x, m, h, u, adj, params):
    x_in = [x, m, h] if u is None else [x, m, u, h]
    xt = jnp.transpose(jnp.concatenate(x_in, axis=1), (0, 2, 1))
    ht = jnp.transpose(h, (0, 2, 1))
    x1 = xt @ params["w_in"] + params["b_in"]
    aggs = [jnp.einsum("wv,bvc->bwc", adj[s], x1) for s in range(adj.shape[0])]
    gc = jnp.concatenate(aggs, -1) @ params["w_gc"] + params["b_gc"]
    o = jnp.concatenate([gc, ht], -1) @ params["w_out"] + params["b_out"]
    a = params["alpha"][0, 0]
    o = jnp.where(o > 0, o, a * o)
    cat2 = jnp.concatenate([o, ht], -1)
    yr = cat2 @ params["w_read"] + params["b_read"]
    return jnp.transpose(yr, (0, 2, 1)), jnp.transpose(cat2, (0, 2, 1))


if __name__ == "__main__":
    key = jax.random.PRNGKey(0)
    B, N = 2, 16                      # batch, nodes
    c_x, c_m, c_u = 4, 4, 4           # feature channels of x, mask, exogenous u
    d_model, d_out, support_len = 32, 4, 2
    d_in = c_x + c_m + c_u + d_model  # lin_in input channels (cat([x, m, u, h]))

    k = jax.random.split(key, 6)
    x = jax.random.normal(k[0], (B, c_x, N), jnp.float32)
    m = (jax.random.uniform(k[1], (B, c_m, N)) > 0.5).astype(jnp.float32)
    u = jax.random.normal(k[2], (B, c_u, N), jnp.float32)
    h = jax.random.normal(k[3], (B, d_model, N), jnp.float32)
    adj_raw = jax.random.uniform(k[4], (support_len, N, N), jnp.float32)
    adj = adj_raw / jnp.sum(adj_raw, axis=-1, keepdims=True)  # row-normalized supports

    params = make_spatial_decoder_params(k[5], d_in, d_model, d_out, support_len)

    y_read_r, y_repr_r = spatial_decoder_reference(x, m, h, u, adj, params)

    # f32 path
    fwd = jax.jit(functools.partial(spatial_decoder_forward, d_model=d_model))
    y_read, y_repr = fwd(x, m, h, u, adj, params)
    jax.block_until_ready((y_read, y_repr))
    assert y_read.shape == (B, d_out, N) and y_repr.shape == (B, 2 * d_model, N)
    assert jnp.allclose(y_read, y_read_r, atol=5e-4, rtol=5e-4)
    assert jnp.allclose(y_repr, y_repr_r, atol=5e-4, rtol=5e-4)

    # bf16 graph-conv streaming dtype (v6e/v7x fast path), f32 accumulation
    fwd_bf16 = jax.jit(functools.partial(spatial_decoder_forward, d_model=d_model,
                                         conv_dtype=jnp.bfloat16))
    y_read_b, y_repr_b = fwd_bf16(x, m, h, u, adj, params)
    jax.block_until_ready((y_read_b, y_repr_b))
    assert jnp.allclose(y_read_b, y_read_r, atol=5e-2, rtol=5e-2)
    assert jnp.allclose(y_repr_b, y_repr_r, atol=5e-2, rtol=5e-2)

    print("KERNEL_OK")
</pallas_src>

<mosaic_0001>
module attributes {stable_mosaic.version = 11 : i64} {
  func.func @_decoder_kernel(%arg0: i32, %arg1: i32, %arg2: memref<2x12x16xf32, #tpu.memory_space<vmem>>, %arg3: memref<2x32x16xf32, #tpu.memory_space<vmem>>, %arg4: memref<2x32x16xf32, #tpu.memory_space<vmem>>, %arg5: memref<2x16x16xf32, #tpu.memory_space<vmem>>, %arg6: memref<32x12xf32, #tpu.memory_space<vmem>>, %arg7: memref<32x32xf32, #tpu.memory_space<vmem>>, %arg8: memref<32x1xf32, #tpu.memory_space<vmem>>, %arg9: memref<2x32x32xf32, #tpu.memory_space<vmem>>, %arg10: memref<32x1xf32, #tpu.memory_space<vmem>>, %arg11: memref<32x32xf32, #tpu.memory_space<vmem>>, %arg12: memref<32x32xf32, #tpu.memory_space<vmem>>, %arg13: memref<32x1xf32, #tpu.memory_space<vmem>>, %arg14: memref<4x32xf32, #tpu.memory_space<vmem>>, %arg15: memref<4x32xf32, #tpu.memory_space<vmem>>, %arg16: memref<4x1xf32, #tpu.memory_space<vmem>>, %arg17: memref<1xf32, #tpu.memory_space<smem>>, %arg18: memref<2x4x16xf32, #tpu.memory_space<vmem>>, %arg19: memref<2x64x16xf32, #tpu.memory_space<vmem>>) attributes {dimension_semantics = [#tpu.dimension_semantics<parallel>, #tpu.dimension_semantics<parallel>], iteration_bounds = array<i64: 1, 1>, scalar_prefetch = 0 : i64, scratch_operands = 0 : i64, tpu.core_type = #tpu.core_type<tc>, window_params = [{transform_indices = @transform_0, window_bounds = array<i64: 2, 12, 16>}, {transform_indices = @transform_1, window_bounds = array<i64: 2, 32, 16>}, {transform_indices = @transform_2, window_bounds = array<i64: 2, 32, 16>}, {transform_indices = @transform_3, window_bounds = array<i64: 2, 16, 16>}, {pipeline_mode = #tpu.pipeline_mode<synchronous>, transform_indices = @transform_4, window_bounds = array<i64: 32, 12>}, {pipeline_mode = #tpu.pipeline_mode<synchronous>, transform_indices = @transform_5, window_bounds = array<i64: 32, 32>}, {pipeline_mode = #tpu.pipeline_mode<synchronous>, transform_indices = @transform_6, window_bounds = array<i64: 32, 1>}, {pipeline_mode = #tpu.pipeline_mode<synchronous>, transform_indices = @transform_7, window_bounds = array<i64: 2, 32, 32>}, {pipeline_mode = #tpu.pipeline_mode<synchronous>, transform_indices = @transform_8, window_bounds = array<i64: 32, 1>}, {pipeline_mode = #tpu.pipeline_mode<synchronous>, transform_indices = @transform_9, window_bounds = array<i64: 32, 32>}, {pipeline_mode = #tpu.pipeline_mode<synchronous>, transform_indices = @transform_10, window_bounds = array<i64: 32, 32>}, {pipeline_mode = #tpu.pipeline_mode<synchronous>, transform_indices = @transform_11, window_bounds = array<i64: 32, 1>}, {pipeline_mode = #tpu.pipeline_mode<synchronous>, transform_indices = @transform_12, window_bounds = array<i64: 4, 32>}, {pipeline_mode = #tpu.pipeline_mode<synchronous>, transform_indices = @transform_13, window_bounds = array<i64: 4, 32>}, {pipeline_mode = #tpu.pipeline_mode<synchronous>, transform_indices = @transform_14, window_bounds = array<i64: 4, 1>}, {transform_indices = @transform_15, window_bounds = array<i64: 1>}, {transform_indices = @transform_16, window_bounds = array<i64: 2, 4, 16>}, {transform_indices = @transform_17, window_bounds = array<i64: 2, 64, 16>}]} {
    %c0 = arith.constant 0 : index
    %0 = memref.load %arg17[%c0] : memref<1xf32, #tpu.memory_space<smem>>
    %c0_0 = arith.constant 0 : index
    %c0_1 = arith.constant 0 : index
    %1 = vector.load %arg6[%c0_0, %c0_1] : memref<32x12xf32, #tpu.memory_space<vmem>>, vector<32x12xf32>
    %c0_2 = arith.constant 0 : index
    %c0_3 = arith.constant 0 : index
    %c0_4 = arith.constant 0 : index
    %2 = vector.load %arg2[%c0_2, %c0_3, %c0_4] : memref<2x12x16xf32, #tpu.memory_space<vmem>>, vector<1x12x16xf32>
    %3 = vector.shape_cast %2 : vector<1x12x16xf32> to vector<12x16xf32>
    %cst = arith.constant dense<0.000000e+00> : vector<32x16xf32>
    %4 = tpu.matmul %1, %3, %cst {dimension_numbers = #tpu.dot_dimension_numbers<[1], [0], [0], [1], [0, 0, 1, 1], [], []>} : vector<32x12xf32>, vector<12x16xf32>, vector<32x16xf32> -> vector<32x16xf32>
    %c0_5 = arith.constant 0 : index
    %c0_6 = arith.constant 0 : index
    %5 = vector.load %arg7[%c0_5, %c0_6] : memref<32x32xf32, #tpu.memory_space<vmem>>, vector<32x32xf32>
    %c0_7 = arith.constant 0 : index
    %c0_8 = arith.constant 0 : index
    %c0_9 = arith.constant 0 : index
    %6 = vector.load %arg3[%c0_7, %c0_8, %c0_9] : memref<2x32x16xf32, #tpu.memory_space<vmem>>, vector<1x32x16xf32>
    %7 = vector.shape_cast %6 : vector<1x32x16xf32> to vector<32x16xf32>
    %cst_10 = arith.constant dense<0.000000e+00> : vector<32x16xf32>
    %8 = tpu.matmul %5, %7, %cst_10 {dimension_numbers = #tpu.dot_dimension_numbers<[1], [0], [0], [1], [0, 0, 1, 1], [], []>} : vector<32x32xf32>, vector<32x16xf32>, vector<32x16xf32> -> vector<32x16xf32>
    %9 = arith.addf %4, %8 : vector<32x16xf32>
    %c0_11 = arith.constant 0 : index
    %c0_12 = arith.constant 0 : index
    %10 = vector.load %arg8[%c0_11, %c0_12] : memref<32x1xf32, #tpu.memory_space<vmem>>, vector<32x1xf32>
    %11 = vector.broadcast %10 : vector<32x1xf32> to vector<32x16xf32>
    %12 = arith.addf %9, %11 : vector<32x16xf32>
    %c0_13 = arith.constant 0 : index
    %c0_14 = arith.constant 0 : index
    %c0_15 = arith.constant 0 : index
    %13 = vector.load %arg9[%c0_13, %c0_14, %c0_15] : memref<2x32x32xf32, #tpu.memory_space<vmem>>, vector<1x32x32xf32>
    %14 = vector.shape_cast %13 : vector<1x32x32xf32> to vector<32x32xf32>
    %cst_16 = arith.constant dense<0.000000e+00> : vector<32x16xf32>
    %15 = tpu.matmul %14, %12, %cst_16 {dimension_numbers = #tpu.dot_dimension_numbers<[1], [0], [0], [1], [0, 0, 1, 1], [], []>} : vector<32x32xf32>, vector<32x16xf32>, vector<32x16xf32> -> vector<32x16xf32>
    %c0_17 = arith.constant 0 : index
    %c0_18 = arith.constant 0 : index
    %c0_19 = arith.constant 0 : index
    %16 = vector.load %arg5[%c0_17, %c0_18, %c0_19] : memref<2x16x16xf32, #tpu.memory_space<vmem>>, vector<1x16x16xf32>
    %17 = vector.shape_cast %16 : vector<1x16x16xf32> to vector<16x16xf32>
    %cst_20 = arith.constant dense<0.000000e+00> : vector<32x16xf32>
    %18 = tpu.matmul %15, %17, %cst_20 {dimension_numbers = #tpu.dot_dimension_numbers<[1], [0], [0], [1], [0, 0, 1, 1], [], []>} : vector<32x16xf32>, vector<16x16xf32>, vector<32x16xf32> -> vector<32x16xf32>
    %c1 = arith.constant 1 : index
    %c0_21 = arith.constant 0 : index
    %c0_22 = arith.constant 0 : index
    %19 = vector.load %arg9[%c1, %c0_21, %c0_22] : memref<2x32x32xf32, #tpu.memory_space<vmem>>, vector<1x32x32xf32>
    %20 = vector.shape_cast %19 : vector<1x32x32xf32> to vector<32x32xf32>
    %cst_23 = arith.constant dense<0.000000e+00> : vector<32x16xf32>
    %21 = tpu.matmul %20, %12, %cst_23 {dimension_numbers = #tpu.dot_dimension_numbers<[1], [0], [0], [1], [0, 0, 1, 1], [], []>} : vector<32x32xf32>, vector<32x16xf32>, vector<32x16xf32> -> vector<32x16xf32>
    %c1_24 = arith.constant 1 : index
    %c0_25 = arith.constant 0 : index
    %c0_26 = arith.constant 0 : index
    %22 = vector.load %arg5[%c1_24, %c0_25, %c0_26] : memref<2x16x16xf32, #tpu.memory_space<vmem>>, vector<1x16x16xf32>
    %23 = vector.shape_cast %22 : vector<1x16x16xf32> to vector<16x16xf32>
    %cst_27 = arith.constant dense<0.000000e+00> : vector<32x16xf32>
    %24 = tpu.matmul %21, %23, %cst_27 {dimension_numbers = #tpu.dot_dimension_numbers<[1], [0], [0], [1], [0, 0, 1, 1], [], []>} : vector<32x16xf32>, vector<16x16xf32>, vector<32x16xf32> -> vector<32x16xf32>
    %25 = arith.addf %18, %24 : vector<32x16xf32>
    %c0_28 = arith.constant 0 : index
    %c0_29 = arith.constant 0 : index
    %26 = vector.load %arg10[%c0_28, %c0_29] : memref<32x1xf32, #tpu.memory_space<vmem>>, vector<32x1xf32>
    %27 = vector.broadcast %26 : vector<32x1xf32> to vector<32x16xf32>
    %28 = arith.addf %25, %27 : vector<32x16xf32>
    %c0_30 = arith.constant 0 : index
    %c0_31 = arith.constant 0 : index
    %c0_32 = arith.constant 0 : index
    %29 = vector.load %arg4[%c0_30, %c0_31, %c0_32] : memref<2x32x16xf32, #tpu.memory_space<vmem>>, vector<1x32x16xf32>
    %30 = vector.shape_cast %29 : vector<1x32x16xf32> to vector<32x16xf32>
    %c0_33 = arith.constant 0 : index
    %c0_34 = arith.constant 0 : index
    %31 = vector.load %arg11[%c0_33, %c0_34] : memref<32x32xf32, #tpu.memory_space<vmem>>, vector<32x32xf32>
    %cst_35 = arith.constant dense<0.000000e+00> : vector<32x16xf32>
    %32 = tpu.matmul %31, %28, %cst_35 {dimension_numbers = #tpu.dot_dimension_numbers<[1], [0], [0], [1], [0, 0, 1, 1], [], []>} : vector<32x32xf32>, vector<32x16xf32>, vector<32x16xf32> -> vector<32x16xf32>
    %c0_36 = arith.constant 0 : index
    %c0_37 = arith.constant 0 : index
    %33 = vector.load %arg12[%c0_36, %c0_37] : memref<32x32xf32, #tpu.memory_space<vmem>>, vector<32x32xf32>
    %cst_38 = arith.constant dense<0.000000e+00> : vector<32x16xf32>
    %34 = tpu.matmul %33, %30, %cst_38 {dimension_numbers = #tpu.dot_dimension_numbers<[1], [0], [0], [1], [0, 0, 1, 1], [], []>} : vector<32x32xf32>, vector<32x16xf32>, vector<32x16xf32> -> vector<32x16xf32>
    %35 = arith.addf %32, %34 : vector<32x16xf32>
    %c0_39 = arith.constant 0 : index
    %c0_40 = arith.constant 0 : index
    %36 = vector.load %arg13[%c0_39, %c0_40] : memref<32x1xf32, #tpu.memory_space<vmem>>, vector<32x1xf32>
    %37 = vector.broadcast %36 : vector<32x1xf32> to vector<32x16xf32>
    %38 = arith.addf %35, %37 : vector<32x16xf32>
    %cst_41 = arith.constant 0.000000e+00 : f32
    %39 = vector.broadcast %cst_41 : f32 to vector<32x16xf32>
    %40 = arith.cmpf ogt, %38, %39 : vector<32x16xf32>
    %41 = vector.broadcast %0 : f32 to vector<32x16xf32>
    %42 = arith.mulf %41, %38 : vector<32x16xf32>
    %43 = arith.select %40, %38, %42 : vector<32x16xi1>, vector<32x16xf32>
    %c0_42 = arith.constant 0 : index
    %c0_43 = arith.constant 0 : index
    %c0_44 = arith.constant 0 : index
    %44 = vector.load %arg19[%c0_42, %c0_43, %c0_44] : memref<2x64x16xf32, #tpu.memory_space<vmem>>, vector<1x32x16xf32>
    %45 = vector.shape_cast %44 : vector<1x32x16xf32> to vector<32x16xf32>
    %46 = vector.shape_cast %43 : vector<32x16xf32> to vector<1x32x16xf32>
    tpu.vector_store %arg19[%c0_42, %c0_43, %c0_44], %46 {strides = array<i32>} : memref<2x64x16xf32, #tpu.memory_space<vmem>>, vector<1x32x16xf32>,
    %c0_45 = arith.constant 0 : index
    %c32 = arith.constant 32 : index
    %c0_46 = arith.constant 0 : index
    %47 = vector.load %arg19[%c0_45, %c32, %c0_46] : memref<2x64x16xf32, #tpu.memory_space<vmem>>, vector<1x32x16xf32>
    %48 = vector.shape_cast %47 : vector<1x32x16xf32> to vector<32x16xf32>
    %49 = vector.shape_cast %30 : vector<32x16xf32> to vector<1x32x16xf32>
    tpu.vector_store %arg19[%c0_45, %c32, %c0_46], %49 {strides = array<i32>} : memref<2x64x16xf32, #tpu.memory_space<vmem>>, vector<1x32x16xf32>,
    %c0_47 = arith.constant 0 : index
    %c0_48 = arith.constant 0 : index
    %50 = vector.load %arg14[%c0_47, %c0_48] : memref<4x32xf32, #tpu.memory_space<vmem>>, vector<4x32xf32>
    %cst_49 = arith.constant dense<0.000000e+00> : vector<4x16xf32>
    %51 = tpu.matmul %50, %43, %cst_49 {dimension_numbers = #tpu.dot_dimension_numbers<[1], [0], [0], [1], [0, 0, 1, 1], [], []>} : vector<4x32xf32>, vector<32x16xf32>, vector<4x16xf32> -> vector<4x16xf32>
    %c0_50 = arith.constant 0 : index
    %c0_51 = arith.constant 0 : index
    %52 = vector.load %arg15[%c0_50, %c0_51] : memref<4x32xf32, #tpu.memory_space<vmem>>, vector<4x32xf32>
    %cst_52 = arith.constant dense<0.000000e+00> : vector<4x16xf32>
    %53 = tpu.matmul %52, %30, %cst_52 {dimension_numbers = #tpu.dot_dimension_numbers<[1], [0], [0], [1], [0, 0, 1, 1], [], []>} : vector<4x32xf32>, vector<32x16xf32>, vector<4x16xf32> -> vector<4x16xf32>
    %54 = arith.addf %51, %53 : vector<4x16xf32>
    %c0_53 = arith.constant 0 : index
    %c0_54 = arith.constant 0 : index
    %55 = vector.load %arg16[%c0_53, %c0_54] : memref<4x1xf32, #tpu.memory_space<vmem>>, vector<4x1xf32>
    %56 = vector.broadcast %55 : vector<4x1xf32> to vector<4x16xf32>
    %57 = arith.addf %54, %56 : vector<4x16xf32>
    %c0_55 = arith.constant 0 : index
    %c0_56 = arith.constant 0 : index
    %c0_57 = arith.constant 0 : index
    %58 = vector.load %arg18[%c0_55, %c0_56, %c0_57] : memref<2x4x16xf32, #tpu.memory_space<vmem>>, vector<1x4x16xf32>
    %59 = vector.shape_cast %58 : vector<1x4x16xf32> to vector<4x16xf32>
    %60 = vector.shape_cast %57 : vector<4x16xf32> to vector<1x4x16xf32>
    tpu.vector_store %arg18[%c0_55, %c0_56, %c0_57], %60 {strides = array<i32>} : memref<2x4x16xf32, #tpu.memory_space<vmem>>, vector<1x4x16xf32>,
    %c0_58 = arith.constant 0 : index
    %c0_59 = arith.constant 0 : index
    %61 = vector.load %arg6[%c0_58, %c0_59] : memref<32x12xf32, #tpu.memory_space<vmem>>, vector<32x12xf32>
    %c1_60 = arith.constant 1 : index
    %c0_61 = arith.constant 0 : index
    %c0_62 = arith.constant 0 : index
    %62 = vector.load %arg2[%c1_60, %c0_61, %c0_62] : memref<2x12x16xf32, #tpu.memory_space<vmem>>, vector<1x12x16xf32>
    %63 = vector.shape_cast %62 : vector<1x12x16xf32> to vector<12x16xf32>
    %cst_63 = arith.constant dense<0.000000e+00> : vector<32x16xf32>
    %64 = tpu.matmul %61, %63, %cst_63 {dimension_numbers = #tpu.dot_dimension_numbers<[1], [0], [0], [1], [0, 0, 1, 1], [], []>} : vector<32x12xf32>, vector<12x16xf32>, vector<32x16xf32> -> vector<32x16xf32>
    %c0_64 = arith.constant 0 : index
    %c0_65 = arith.constant 0 : index
    %65 = vector.load %arg7[%c0_64, %c0_65] : memref<32x32xf32, #tpu.memory_space<vmem>>, vector<32x32xf32>
    %c1_66 = arith.constant 1 : index
    %c0_67 = arith.constant 0 : index
    %c0_68 = arith.constant 0 : index
    %66 = vector.load %arg3[%c1_66, %c0_67, %c0_68] : memref<2x32x16xf32, #tpu.memory_space<vmem>>, vector<1x32x16xf32>
    %67 = vector.shape_cast %66 : vector<1x32x16xf32> to vector<32x16xf32>
    %cst_69 = arith.constant dense<0.000000e+00> : vector<32x16xf32>
    %68 = tpu.matmul %65, %67, %cst_69 {dimension_numbers = #tpu.dot_dimension_numbers<[1], [0], [0], [1], [0, 0, 1, 1], [], []>} : vector<32x32xf32>, vector<32x16xf32>, vector<32x16xf32> -> vector<32x16xf32>
    %69 = arith.addf %64, %68 : vector<32x16xf32>
    %c0_70 = arith.constant 0 : index
    %c0_71 = arith.constant 0 : index
    %70 = vector.load %arg8[%c0_70, %c0_71] : memref<32x1xf32, #tpu.memory_space<vmem>>, vector<32x1xf32>
    %71 = vector.broadcast %70 : vector<32x1xf32> to vector<32x16xf32>
    %72 = arith.addf %69, %71 : vector<32x16xf32>
    %c0_72 = arith.constant 0 : index
    %c0_73 = arith.constant 0 : index
    %c0_74 = arith.constant 0 : index
    %73 = vector.load %arg9[%c0_72, %c0_73, %c0_74] : memref<2x32x32xf32, #tpu.memory_space<vmem>>, vector<1x32x32xf32>
    %74 = vector.shape_cast %73 : vector<1x32x32xf32> to vector<32x32xf32>
    %cst_75 = arith.constant dense<0.000000e+00> : vector<32x16xf32>
    %75 = tpu.matmul %74, %72, %cst_75 {dimension_numbers = #tpu.dot_dimension_numbers<[1], [0], [0], [1], [0, 0, 1, 1], [], []>} : vector<32x32xf32>, vector<32x16xf32>, vector<32x16xf32> -> vector<32x16xf32>
    %c0_76 = arith.constant 0 : index
    %c0_77 = arith.constant 0 : index
    %c0_78 = arith.constant 0 : index
    %76 = vector.load %arg5[%c0_76, %c0_77, %c0_78] : memref<2x16x16xf32, #tpu.memory_space<vmem>>, vector<1x16x16xf32>
    %77 = vector.shape_cast %76 : vector<1x16x16xf32> to vector<16x16xf32>
    %cst_79 = arith.constant dense<0.000000e+00> : vector<32x16xf32>
    %78 = tpu.matmul %75, %77, %cst_79 {dimension_numbers = #tpu.dot_dimension_numbers<[1], [0], [0], [1], [0, 0, 1, 1], [], []>} : vector<32x16xf32>, vector<16x16xf32>, vector<32x16xf32> -> vector<32x16xf32>
    %c1_80 = arith.constant 1 : index
    %c0_81 = arith.constant 0 : index
    %c0_82 = arith.constant 0 : index
    %79 = vector.load %arg9[%c1_80, %c0_81, %c0_82] : memref<2x32x32xf32, #tpu.memory_space<vmem>>, vector<1x32x32xf32>
    %80 = vector.shape_cast %79 : vector<1x32x32xf32> to vector<32x32xf32>
    %cst_83 = arith.constant dense<0.000000e+00> : vector<32x16xf32>
    %81 = tpu.matmul %80, %72, %cst_83 {dimension_numbers = #tpu.dot_dimension_numbers<[1], [0], [0], [1], [0, 0, 1, 1], [], []>} : vector<32x32xf32>, vector<32x16xf32>, vector<32x16xf32> -> vector<32x16xf32>
    %c1_84 = arith.constant 1 : index
    %c0_85 = arith.constant 0 : index
    %c0_86 = arith.constant 0 : index
    %82 = vector.load %arg5[%c1_84, %c0_85, %c0_86] : memref<2x16x16xf32, #tpu.memory_space<vmem>>, vector<1x16x16xf32>
    %83 = vector.shape_cast %82 : vector<1x16x16xf32> to vector<16x16xf32>
    %cst_87 = arith.constant dense<0.000000e+00> : vector<32x16xf32>
    %84 = tpu.matmul %81, %83, %cst_87 {dimension_numbers = #tpu.dot_dimension_numbers<[1], [0], [0], [1], [0, 0, 1, 1], [], []>} : vector<32x16xf32>, vector<16x16xf32>, vector<32x16xf32> -> vector<32x16xf32>
    %85 = arith.addf %78, %84 : vector<32x16xf32>
    %c0_88 = arith.constant 0 : index
    %c0_89 = arith.constant 0 : index
    %86 = vector.load %arg10[%c0_88, %c0_89] : memref<32x1xf32, #tpu.memory_space<vmem>>, vector<32x1xf32>
    %87 = vector.broadcast %86 : vector<32x1xf32> to vector<32x16xf32>
    %88 = arith.addf %85, %87 : vector<32x16xf32>
    %c1_90 = arith.constant 1 : index
    %c0_91 = arith.constant 0 : index
    %c0_92 = arith.constant 0 : index
    %89 = vector.load %arg4[%c1_90, %c0_91, %c0_92] : memref<2x32x16xf32, #tpu.memory_space<vmem>>, vector<1x32x16xf32>
    %90 = vector.shape_cast %89 : vector<1x32x16xf32> to vector<32x16xf32>
    %c0_93 = arith.constant 0 : index
    %c0_94 = arith.constant 0 : index
    %91 = vector.load %arg11[%c0_93, %c0_94] : memref<32x32xf32, #tpu.memory_space<vmem>>, vector<32x32xf32>
    %cst_95 = arith.constant dense<0.000000e+00> : vector<32x16xf32>
    %92 = tpu.matmul %91, %88, %cst_95 {dimension_numbers = #tpu.dot_dimension_numbers<[1], [0], [0], [1], [0, 0, 1, 1], [], []>} : vector<32x32xf32>, vector<32x16xf32>, vector<32x16xf32> -> vector<32x16xf32>
    %c0_96 = arith.constant 0 : index
    %c0_97 = arith.constant 0 : index
    %93 = vector.load %arg12[%c0_96, %c0_97] : memref<32x32xf32, #tpu.memory_space<vmem>>, vector<32x32xf32>
    %cst_98 = arith.constant dense<0.000000e+00> : vector<32x16xf32>
    %94 = tpu.matmul %93, %90, %cst_98 {dimension_numbers = #tpu.dot_dimension_numbers<[1], [0], [0], [1], [0, 0, 1, 1], [], []>} : vector<32x32xf32>, vector<32x16xf32>, vector<32x16xf32> -> vector<32x16xf32>
    %95 = arith.addf %92, %94 : vector<32x16xf32>
    %c0_99 = arith.constant 0 : index
    %c0_100 = arith.constant 0 : index
    %96 = vector.load %arg13[%c0_99, %c0_100] : memref<32x1xf32, #tpu.memory_space<vmem>>, vector<32x1xf32>
    %97 = vector.broadcast %96 : vector<32x1xf32> to vector<32x16xf32>
    %98 = arith.addf %95, %97 : vector<32x16xf32>
    %cst_101 = arith.constant 0.000000e+00 : f32
    %99 = vector.broadcast %cst_101 : f32 to vector<32x16xf32>
    %100 = arith.cmpf ogt, %98, %99 : vector<32x16xf32>
    %101 = vector.broadcast %0 : f32 to vector<32x16xf32>
    %102 = arith.mulf %101, %98 : vector<32x16xf32>
    %103 = arith.select %100, %98, %102 : vector<32x16xi1>, vector<32x16xf32>
    %c1_102 = arith.constant 1 : index
    %c0_103 = arith.constant 0 : index
    %c0_104 = arith.constant 0 : index
    %104 = vector.load %arg19[%c1_102, %c0_103, %c0_104] : memref<2x64x16xf32, #tpu.memory_space<vmem>>, vector<1x32x16xf32>
    %105 = vector.shape_cast %104 : vector<1x32x16xf32> to vector<32x16xf32>
    %106 = vector.shape_cast %103 : vector<32x16xf32> to vector<1x32x16xf32>
    tpu.vector_store %arg19[%c1_102, %c0_103, %c0_104], %106 {strides = array<i32>} : memref<2x64x16xf32, #tpu.memory_space<vmem>>, vector<1x32x16xf32>,
    %c1_105 = arith.constant 1 : index
    %c32_106 = arith.constant 32 : index
    %c0_107 = arith.constant 0 : index
    %107 = vector.load %arg19[%c1_105, %c32_106, %c0_107] : memref<2x64x16xf32, #tpu.memory_space<vmem>>, vector<1x32x16xf32>
    %108 = vector.shape_cast %107 : vector<1x32x16xf32> to vector<32x16xf32>
    %109 = vector.shape_cast %90 : vector<32x16xf32> to vector<1x32x16xf32>
    tpu.vector_store %arg19[%c1_105, %c32_106, %c0_107], %109 {strides = array<i32>} : memref<2x64x16xf32, #tpu.memory_space<vmem>>, vector<1x32x16xf32>,
    %c0_108 = arith.constant 0 : index
    %c0_109 = arith.constant 0 : index
    %110 = vector.load %arg14[%c0_108, %c0_109] : memref<4x32xf32, #tpu.memory_space<vmem>>, vector<4x32xf32>
    %cst_110 = arith.constant dense<0.000000e+00> : vector<4x16xf32>
    %111 = tpu.matmul %110, %103, %cst_110 {dimension_numbers = #tpu.dot_dimension_numbers<[1], [0], [0], [1], [0, 0, 1, 1], [], []>} : vector<4x32xf32>, vector<32x16xf32>, vector<4x16xf32> -> vector<4x16xf32>
    %c0_111 = arith.constant 0 : index
    %c0_112 = arith.constant 0 : index
    %112 = vector.load %arg15[%c0_111, %c0_112] : memref<4x32xf32, #tpu.memory_space<vmem>>, vector<4x32xf32>
    %cst_113 = arith.constant dense<0.000000e+00> : vector<4x16xf32>
    %113 = tpu.matmul %112, %90, %cst_113 {dimension_numbers = #tpu.dot_dimension_numbers<[1], [0], [0], [1], [0, 0, 1, 1], [], []>} : vector<4x32xf32>, vector<32x16xf32>, vector<4x16xf32> -> vector<4x16xf32>
    %114 = arith.addf %111, %113 : vector<4x16xf32>
    %c0_114 = arith.constant 0 : index
    %c0_115 = arith.constant 0 : index
    %115 = vector.load %arg16[%c0_114, %c0_115] : memref<4x1xf32, #tpu.memory_space<vmem>>, vector<4x1xf32>
    %116 = vector.broadcast %115 : vector<4x1xf32> to vector<4x16xf32>
    %117 = arith.addf %114, %116 : vector<4x16xf32>
    %c1_116 = arith.constant 1 : index
    %c0_117 = arith.constant 0 : index
    %c0_118 = arith.constant 0 : index
    %118 = vector.load %arg18[%c1_116, %c0_117, %c0_118] : memref<2x4x16xf32, #tpu.memory_space<vmem>>, vector<1x4x16xf32>
    %119 = vector.shape_cast %118 : vector<1x4x16xf32> to vector<4x16xf32>
    %120 = vector.shape_cast %117 : vector<4x16xf32> to vector<1x4x16xf32>
    tpu.vector_store %arg18[%c1_116, %c0_117, %c0_118], %120 {strides = array<i32>} : memref<2x4x16xf32, #tpu.memory_space<vmem>>, vector<1x4x16xf32>,
    return
  }
  func.func @transform_0(%arg0: i32, %arg1: i32) -> (i32, i32, i32) {
    %c0_i32 = arith.constant 0 : i32
    %c0_i32_0 = arith.constant 0 : i32
    %c0_i32_1 = arith.constant 0 : i32
    return %arg0, %c0_i32, %c0_i32_0 : i32, i32, i32
  }
  func.func @transform_1(%arg0: i32, %arg1: i32) -> (i32, i32, i32) {
    %c0_i32 = arith.constant 0 : i32
    %c0_i32_0 = arith.constant 0 : i32
    %c0_i32_1 = arith.constant 0 : i32
    return %arg0, %c0_i32, %c0_i32_0 : i32, i32, i32
  }
  func.func @transform_2(%arg0: i32, %arg1: i32) -> (i32, i32, i32) {
    %c0_i32 = arith.constant 0 : i32
    %c0_i32_0 = arith.constant 0 : i32
    return %arg0, %c0_i32, %arg1 : i32, i32, i32
  }
  func.func @transform_3(%arg0: i32, %arg1: i32) -> (i32, i32, i32) {
    %c0_i32 = arith.constant 0 : i32
    %c0_i32_0 = arith.constant 0 : i32
    %c0_i32_1 = arith.constant 0 : i32
    return %c0_i32, %c0_i32_0, %arg1 : i32, i32, i32
  }
  func.func @transform_4(%arg0: i32, %arg1: i32) -> (i32, i32) {
    %c0_i32 = arith.constant 0 : i32
    %c0_i32_0 = arith.constant 0 : i32
    %c0_i32_1 = arith.constant 0 : i32
    return %c0_i32, %c0_i32_0 : i32, i32
  }
  func.func @transform_5(%arg0: i32, %arg1: i32) -> (i32, i32) {
    %c0_i32 = arith.constant 0 : i32
    %c0_i32_0 = arith.constant 0 : i32
    %c0_i32_1 = arith.constant 0 : i32
    return %c0_i32, %c0_i32_0 : i32, i32
  }
  func.func @transform_6(%arg0: i32, %arg1: i32) -> (i32, i32) {
    %c0_i32 = arith.constant 0 : i32
    %c0_i32_0 = arith.constant 0 : i32
    %c0_i32_1 = arith.constant 0 : i32
    return %c0_i32, %c0_i32_0 : i32, i32
  }
  func.func @transform_7(%arg0: i32, %arg1: i32) -> (i32, i32, i32) {
    %c0_i32 = arith.constant 0 : i32
    %c0_i32_0 = arith.constant 0 : i32
    %c0_i32_1 = arith.constant 0 : i32
    %c0_i32_2 = arith.constant 0 : i32
    return %c0_i32, %c0_i32_0, %c0_i32_1 : i32, i32, i32
  }
  func.func @transform_8(%arg0: i32, %arg1: i32) -> (i32, i32) {
    %c0_i32 = arith.constant 0 : i32
    %c0_i32_0 = arith.constant 0 : i32
    %c0_i32_1 = arith.constant 0 : i32
    return %c0_i32, %c0_i32_0 : i32, i32
  }
  func.func @transform_9(%arg0: i32, %arg1: i32) -> (i32, i32) {
    %c0_i32 = arith.constant 0 : i32
    %c0_i32_0 = arith.constant 0 : i32
    %c0_i32_1 = arith.constant 0 : i32
    return %c0_i32, %c0_i32_0 : i32, i32
  }
  func.func @transform_10(%arg0: i32, %arg1: i32) -> (i32, i32) {
    %c0_i32 = arith.constant 0 : i32
    %c0_i32_0 = arith.constant 0 : i32
    %c0_i32_1 = arith.constant 0 : i32
    return %c0_i32, %c0_i32_0 : i32, i32
  }
  func.func @transform_11(%arg0: i32, %arg1: i32) -> (i32, i32) {
    %c0_i32 = arith.constant 0 : i32
    %c0_i32_0 = arith.constant 0 : i32
    %c0_i32_1 = arith.constant 0 : i32
    return %c0_i32, %c0_i32_0 : i32, i32
  }
  func.func @transform_12(%arg0: i32, %arg1: i32) -> (i32, i32) {
    %c0_i32 = arith.constant 0 : i32
    %c0_i32_0 = arith.constant 0 : i32
    %c0_i32_1 = arith.constant 0 : i32
    return %c0_i32, %c0_i32_0 : i32, i32
  }
  func.func @transform_13(%arg0: i32, %arg1: i32) -> (i32, i32) {
    %c0_i32 = arith.constant 0 : i32
    %c0_i32_0 = arith.constant 0 : i32
    %c0_i32_1 = arith.constant 0 : i32
    return %c0_i32, %c0_i32_0 : i32, i32
  }
  func.func @transform_14(%arg0: i32, %arg1: i32) -> (i32, i32) {
    %c0_i32 = arith.constant 0 : i32
    %c0_i32_0 = arith.constant 0 : i32
    %c0_i32_1 = arith.constant 0 : i32
    return %c0_i32, %c0_i32_0 : i32, i32
  }
  func.func @transform_15(%arg0: i32, %arg1: i32) -> i32 {
    %c0_i32 = arith.constant 0 : i32
    %c0_i32_0 = arith.constant 0 : i32
    return %c0_i32 : i32
  }
  func.func @transform_16(%arg0: i32, %arg1: i32) -> (i32, i32, i32) {
    %c0_i32 = arith.constant 0 : i32
    %c0_i32_0 = arith.constant 0 : i32
    return %arg0, %c0_i32, %arg1 : i32, i32, i32
  }
  func.func @transform_17(%arg0: i32, %arg1: i32) -> (i32, i32, i32) {
    %c0_i32 = arith.constant 0 : i32
    %c0_i32_0 = arith.constant 0 : i32
    return %arg0, %c0_i32, %arg1 : i32, i32, i32
  }
}

</mosaic_0001>

<llo_original>
// kernel: spatial_decoder_forward.1
$region0: #{spatial_decoder_forward.1}
  #allocation0 [shape = 'u32[]', space=smem, size = 0x4, offset = 0x4, fixed_abs, tag = 'smem constant byte address 0x4 - core index']
  #allocation1 [shape = 'u32[144,128]{1,0:T(1,128)}', space=vmem, size = 0x12000, scoped, tag = 'internal scratch']
  #allocation2 [shape = 'f32[1]{0:T(128)S(6)}', space=smem, size = 0x200, scoped, tag = 'scoped memory for spatial_decoder_forward.1']
  %s0 = inlined_call_operand.vmem [shape: f32[2,12,16], index: 0, kind: input, shape index: {}]
  %s1 = inlined_call_operand.vmem [shape: f32[2,32,16], index: 1, kind: input, shape index: {}, may-alias: {1,2}]
  %s2 = inlined_call_operand.vmem [shape: f32[2,32,16], index: 2, kind: input, shape index: {}, may-alias: {1,2}]
  %s3 = inlined_call_operand.vmem [shape: f32[2,16,16], index: 3, kind: input, shape index: {}]
  %s4 = inlined_call_operand.vmem [shape: f32[32,12], index: 4, kind: input, shape index: {}]
  %s5 = inlined_call_operand.vmem [shape: f32[32,32], index: 5, kind: input, shape index: {}]
  %s6 = inlined_call_operand.vmem [shape: f32[32,1], index: 6, kind: input, shape index: {}]
  %s7 = inlined_call_operand.vmem [shape: f32[2,32,32], index: 7, kind: input, shape index: {}]
  %s8 = inlined_call_operand.vmem [shape: f32[32,1], index: 8, kind: input, shape index: {}]
  %s9 = inlined_call_operand.vmem [shape: f32[32,32], index: 9, kind: input, shape index: {}]
  %s10 = inlined_call_operand.vmem [shape: f32[32,32], index: 10, kind: input, shape index: {}]
  %s11 = inlined_call_operand.vmem [shape: f32[32,1], index: 11, kind: input, shape index: {}]
  %s12 = inlined_call_operand.vmem [shape: f32[4,32], index: 12, kind: input, shape index: {}]
  %s13 = inlined_call_operand.vmem [shape: f32[4,32], index: 13, kind: input, shape index: {}]
  %s14 = inlined_call_operand.vmem [shape: f32[4,1], index: 14, kind: input, shape index: {}]
  %s15 = inlined_call_operand.<no memory space> [shape: f32[1], index: 15, kind: input, shape index: {}]
  %s16 = inlined_call_operand.hbm [shape: f32[2,4,16], index: 16, kind: output, shape index: {0}]
  %s17 = inlined_call_operand.vmem [shape: f32[2,64,16], index: 17, kind: output, shape index: {1}]
  %18 = xla_tuple %s16, %s17
  %s19 = sld [smem:[#allocation0]]
  $region82: #{spatial_decoder_forward.1} parent=0
    _
  %s21 = ssub.s32 1, %s19
  %s22 = scalar_select 0, %s21, %s19
  %23 = sst [smem:[#allocation2]] %s15
  $region1: #{spatial_decoder_forward.1} parent=0
    #allocation3 [shape = 'u8[4096]{0}', space=vmem, size = 0x1000, scoped, tag = 'output window, operand 0, single buffered']
    #allocation4 [shape = 's32[1]{0}', space=sflag, size = 0x4, scoped, tag = 'scoped memory for spatial_decoder_forward.1']
    %24 = vsyncpa [#allocation4], 0
    // Predicated region
    $region2: #{spatial_decoder_forward.1} parent=1 // pred_check
      _
    $region3: #{spatial_decoder_forward.1} parent=1 // pred_check_branch
      %26 = sbr.rel (0) target = $region5
    $region4: #{spatial_decoder_forward.1} parent=1 // pred_region
      _
    $region5: #{spatial_decoder_forward.1} parent=1 // pred_fallthru
      _
    // Predicated region
    $region6: #{spatial_decoder_forward.1} parent=1 // pred_check
      _
    $region7: #{spatial_decoder_forward.1} parent=1 // pred_check_branch
      %28 = sbr.rel (0) target = $region9
    $region8: #{spatial_decoder_forward.1} parent=1 // pred_region
      _
    $region9: #{spatial_decoder_forward.1} parent=1 // pred_fallthru
      _
    // Predicated region
    $region10: #{spatial_decoder_forward.1} parent=1 // pred_check
      _
    $region11: #{spatial_decoder_forward.1} parent=1 // pred_check_branch
      %30 = sbr.rel (0) target = $region13
    $region12: #{spatial_decoder_forward.1} parent=1 // pred_region
      _
    $region13: #{spatial_decoder_forward.1} parent=1 // pred_fallthru
      _
    // Predicated region
    $region14: #{spatial_decoder_forward.1} parent=1 // pred_check
      _
    $region15: #{spatial_decoder_forward.1} parent=1 // pred_check_branch
      %32 = sbr.rel (0) target = $region17
    $region16: #{spatial_decoder_forward.1} parent=1 // pred_region
      _
    $region17: #{spatial_decoder_forward.1} parent=1 // pred_fallthru
      _
    // Predicated region
    $region18: #{spatial_decoder_forward.1} parent=1 // pred_check
      _
    $region19: #{spatial_decoder_forward.1} parent=1 // pred_check_branch
      %34 = sbr.rel (0) target = $region21
    $region20: #{spatial_decoder_forward.1} parent=1 // pred_region
      _
    $region21: #{spatial_decoder_forward.1} parent=1 // pred_fallthru
      _
    // Predicated region
    $region22: #{spatial_decoder_forward.1} parent=1 // pred_check
      _
    $region23: #{spatial_decoder_forward.1} parent=1 // pred_check_branch
      %36 = sbr.rel (0) target = $region25
    $region24: #{spatial_decoder_forward.1} parent=1 // pred_region
      _
    $region25: #{spatial_decoder_forward.1} parent=1 // pred_fallthru
      _
    // Predicated region
    $region26: #{spatial_decoder_forward.1} parent=1 // pred_check
      _
    $region27: #{spatial_decoder_forward.1} parent=1 // pred_check_branch
      %38 = sbr.rel (0) target = $region29
    $region28: #{spatial_decoder_forward.1} parent=1 // pred_region
      _
    $region29: #{spatial_decoder_forward.1} parent=1 // pred_fallthru
      _
    // Predicated region
    $region30: #{spatial_decoder_forward.1} parent=1 // pred_check
      _
    $region31: #{spatial_decoder_forward.1} parent=1 // pred_check_branch
      %40 = sbr.rel (0) target = $region33
    $region32: #{spatial_decoder_forward.1} parent=1 // pred_region
      _
    $region33: #{spatial_decoder_forward.1} parent=1 // pred_fallthru
      _
    // Predicated region
    $region34: #{spatial_decoder_forward.1} parent=1 // pred_check
      _
    $region35: #{spatial_decoder_forward.1} parent=1 // pred_check_branch
      %42 = sbr.rel (0) target = $region37
    $region36: #{spatial_decoder_forward.1} parent=1 // pred_region
      _
    $region37: #{spatial_decoder_forward.1} parent=1 // pred_fallthru
      _
    // Predicated region
    $region38: #{spatial_decoder_forward.1} parent=1 // pred_check
      _
    $region39: #{spatial_decoder_forward.1} parent=1 // pred_check_branch
      %44 = sbr.rel (0) target = $region41
    $region40: #{spatial_decoder_forward.1} parent=1 // pred_region
      _
    $region41: #{spatial_decoder_forward.1} parent=1 // pred_fallthru
      _
    // Predicated region
    $region42: #{spatial_decoder_forward.1} parent=1 // pred_check
      _
    $region43: #{spatial_decoder_forward.1} parent=1 // pred_check_branch
      %46 = sbr.rel (0) target = $region45
    $region44: #{spatial_decoder_forward.1} parent=1 // pred_region
      _
    $region45: #{spatial_decoder_forward.1} parent=1 // pred_fallthru
      _
    // Predicated region
    $region46: #{spatial_decoder_forward.1} parent=1 // pred_check
      _
    $region47: #{spatial_decoder_forward.1} parent=1 // pred_check_branch
      %48 = sbr.rel (0) target = $region49
    $region48: #{spatial_decoder_forward.1} parent=1 // pred_region
      _
    $region49: #{spatial_decoder_forward.1} parent=1 // pred_fallthru
      _
    // Predicated region
    $region50: #{spatial_decoder_forward.1} parent=1 // pred_check
      _
    $region51: #{spatial_decoder_forward.1} parent=1 // pred_check_branch
      %50 = sbr.rel (0) target = $region53
    $region52: #{spatial_decoder_forward.1} parent=1 // pred_region
      _
    $region53: #{spatial_decoder_forward.1} parent=1 // pred_fallthru
      _
    // Predicated region
    $region54: #{spatial_decoder_forward.1} parent=1 // pred_check
      _
    $region55: #{spatial_decoder_forward.1} parent=1 // pred_check_branch
      %52 = sbr.rel (0) target = $region57
    $region56: #{spatial_decoder_forward.1} parent=1 // pred_region
      _
    $region57: #{spatial_decoder_forward.1} parent=1 // pred_fallthru
      _
    // Predicated region
    $region58: #{spatial_decoder_forward.1} parent=1 // pred_check
      _
    $region59: #{spatial_decoder_forward.1} parent=1 // pred_check_branch
      %54 = sbr.rel (0) target = $region61
    $region60: #{spatial_decoder_forward.1} parent=1 // pred_region
      _
    $region61: #{spatial_decoder_forward.1} parent=1 // pred_fallthru
      _
    // Predicated region
    $region62: #{spatial_decoder_forward.1} parent=1 // pred_check
      _
    $region63: #{spatial_decoder_forward.1} parent=1 // pred_check_branch
      %56 = sbr.rel (0) target = $region65
    $region64: #{spatial_decoder_forward.1} parent=1 // pred_region
      _
    $region65: #{spatial_decoder_forward.1} parent=1 // pred_fallthru
      _
    %s57 = sld [smem:[#allocation2]]
    %v58 = vld [vmem:[%s4] sm:$0xff]
    %v59 = vld [vmem:[%s4 + $0x8] sm:$0xff]
    %v60 = vld [vmem:[%s4 + $0x10] sm:$0xff]
    %v61 = vld [vmem:[%s4 + $0x18] sm:$0xff]
    %v62 = vld [vmem:[%s0] sm:$0xff]
    %v63 = vld [vmem:[%s0 + $0x8] sm:$0xf]
    %v64 = vld [vmem:[%s5] sm:$0xff]
    %v65 = vld [vmem:[%s5 + $0x8] sm:$0xff]
    %v66 = vld [vmem:[%s5 + $0x10] sm:$0xff]
    %v67 = vld [vmem:[%s5 + $0x18] sm:$0xff]
    %v68 = vld [vmem:[%s1] sm:$0xff]
    %v69 = vld [vmem:[%s1 + $0x8] sm:$0xff]
    %v70 = vld [vmem:[%s1 + $0x10] sm:$0xff]
    %v71 = vld [vmem:[%s1 + $0x18] sm:$0xff]
    %vm72 = vcmask 261120
    %v74 = vsel %vm72, %v64, 0
    %v77 = vsel %vm72, %v65, 0
    %v80 = vsel %vm72, %v66, 0
    %v83 = vsel %vm72, %v67, 0
    %85 = vmatprep.subr.mxu0 0.0
    %86 = vmatpush1.msra.mxu0 0.0
    %87 = vmatprep.subr.mxu0 0.0
    %88 = vmatpush1.msra.mxu0 0.0
    %89 = vmatprep.subr.mxu0 0.0
    %90 = vmatpush1.msra.mxu0 0.0
    %91 = vmatprep.subr.mxu0 0.0
    %92 = vmatpush1.msra.mxu0 0.0
    %93 = vmatprep.subr.mxu0 0.0
    %94 = vmatpush1.msra.mxu0 0.0
    %95 = vmatprep.subr.mxu0 0.0
    %96 = vmatpush1.msra.mxu0 0.0
    %97 = vmatprep.subr.mxu0 0.0
    %98 = vmatpush1.msra.mxu0 0.0
    %99 = vmatprep.subr.mxu0 0.0
    %100 = vmatpush1.msra.mxu0 0.0
    %101 = vmatprep.subr.mxu0 0.0
    %102 = vmatpush1.msra.mxu0 0.0
    %103 = vmatprep.subr.mxu0 0.0
    %104 = vmatpush1.msra.mxu0 0.0
    %105 = vmatprep.subr.mxu0 0.0
    %106 = vmatpush1.msra.mxu0 0.0
    %107 = vmatprep.subr.mxu0 0.0
    %108 = vmatpush1.msra.mxu0 0.0
    %109 = vmatprep.subr.mxu0 0.0
    %110 = vmatpush1.msra.mxu0 %v71
    %111 = vmatprep.subr.mxu0 0.0
    %112 = vmatpush1.msra.mxu0 %v70
    %113 = vmatprep.subr.mxu0 0.0
    %114 = vmatpush1.msra.mxu0 %v69
    %115 = vmatprep.subr.mxu0 0.0
    %116 = vmatpush1.msra.mxu0 %v68
    %117 = vmatprep.subr.mxu0 0.0
    %118 = vmatpush2.msra.mxu0 0.0
    %119 = vmatprep.subr.mxu0 0.0
    %120 = vmatpush2.msra.mxu0 0.0
    %121 = vmatprep.subr.mxu0 0.0
    %122 = vmatpush2.msra.mxu0 0.0
    %123 = vmatprep.subr.mxu0 0.0
    %124 = vmatpush2.msra.mxu0 0.0
    %125 = vmatprep.subr.mxu0 0.0
    %126 = vmatpush2.msra.mxu0 0.0
    %127 = vmatprep.subr.mxu0 0.0
    %128 = vmatpush2.msra.mxu0 0.0
    %129 = vmatprep.subr.mxu0 0.0
    %130 = vmatpush2.msra.mxu0 0.0
    %131 = vmatprep.subr.mxu0 0.0
    %132 = vmatpush2.msra.mxu0 0.0
    %133 = vmatprep.subr.mxu0 0.0
    %134 = vmatpush2.msra.mxu0 0.0
    %135 = vmatprep.subr.mxu0 0.0
    %136 = vmatpush2.msra.mxu0 0.0
    %137 = vmatprep.subr.mxu0 0.0
    %138 = vmatpush2.msra.mxu0 0.0
    %139 = vmatprep.subr.mxu0 0.0
    %140 = vmatpush2.msra.mxu0 0.0
    %141 = vmatprep.subr.mxu0 0.0
    %142 = vmatpush2.msra.mxu0 0.0
    %143 = vmatprep.subr.mxu0 0.0
    %144 = vmatpush2.msra.mxu0 0.0
    %145 = vmatprep.subr.mxu0 0.0
    %146 = vmatpush2.msra.mxu0 0.0
    %147 = vmatprep.subr.mxu0 0.0
    %148 = vmatpush2.msra.mxu0 0.0
    %149 = vmatprep.mubr.f32.mxu0 0.0
    %150 = vmatmul.mubr.f32.gmra.mxu0 %v74
    %v151 = vpop.f32.mrf.mxu0
    %v152 = vadd.f32 0.0, %v151
    %v153 = vpop.f32.mrf.mxu0
    %154 = vmatprep.mubr.f32.mxu0 0.0
    %155 = vmatmul.mubr.f32.gmra.mxu0 %v77
    %v156 = vpop.f32.mrf.mxu0
    %v157 = vadd.f32 0.0, %v156
    %v158 = vpop.f32.mrf.mxu0
    %159 = vmatprep.mubr.f32.mxu0 0.0
    %160 = vmatmul.mubr.f32.gmra.mxu0 %v80
    %v161 = vpop.f32.mrf.mxu0
    %v162 = vadd.f32 0.0, %v161
    %v163 = vpop.f32.mrf.mxu0
    %164 = vmatprep.mubr.f32.mxu0 0.0
    %165 = vmatmul.mubr.f32.gmra.mxu0 %v83
    %v166 = vpop.f32.mrf.mxu0
    %v167 = vadd.f32 0.0, %v166
    %v168 = vpop.f32.mrf.mxu0
    %169 = vdwg.mxu0
    %vm170 = vcmask 97280
    %v172 = vsel %vm170, %v58, 0
    %v175 = vsel %vm170, %v59, 0
    %v178 = vsel %vm170, %v60, 0
    %v181 = vsel %vm170, %v61, 0
    %vm183 = vcmask 1043456
    %v185 = vsel %vm183, %v63, 0
    %187 = vmatprep.subr.mxu0 0.0
    %188 = vmatpush1.msra.mxu0 0.0
    %189 = vmatprep.subr.mxu0 0.0
    %190 = vmatpush1.msra.mxu0 0.0
    %191 = vmatprep.subr.mxu0 0.0
    %192 = vmatpush1.msra.mxu0 0.0
    %193 = vmatprep.subr.mxu0 0.0
    %194 = vmatpush1.msra.mxu0 0.0
    %195 = vmatprep.subr.mxu0 0.0
    %196 = vmatpush1.msra.mxu0 0.0
    %197 = vmatprep.subr.mxu0 0.0
    %198 = vmatpush1.msra.mxu0 0.0
    %199 = vmatprep.subr.mxu0 0.0
    %200 = vmatpush1.msra.mxu0 0.0
    %201 = vmatprep.subr.mxu0 0.0
    %202 = vmatpush1.msra.mxu0 0.0
    %203 = vmatprep.subr.mxu0 0.0
    %204 = vmatpush1.msra.mxu0 0.0
    %205 = vmatprep.subr.mxu0 0.0
    %206 = vmatpush1.msra.mxu0 0.0
    %207 = vmatprep.subr.mxu0 0.0
    %208 = vmatpush1.msra.mxu0 0.0
    %209 = vmatprep.subr.mxu0 0.0
    %210 = vmatpush1.msra.mxu0 0.0
    %211 = vmatprep.subr.mxu0 0.0
    %212 = vmatpush1.msra.mxu0 0.0
    %213 = vmatprep.subr.mxu0 0.0
    %214 = vmatpush1.msra.mxu0 0.0
    %215 = vmatprep.subr.mxu0 0.0
    %216 = vmatpush1.msra.mxu0 %v185
    %217 = vmatprep.subr.mxu0 0.0
    %218 = vmatpush1.msra.mxu0 %v62
    %219 = vmatprep.subr.mxu0 0.0
    %220 = vmatpush2.msra.mxu0 0.0
    %221 = vmatprep.subr.mxu0 0.0
    %222 = vmatpush2.msra.mxu0 0.0
    %223 = vmatprep.subr.mxu0 0.0
    %224 = vmatpush2.msra.mxu0 0.0
    %225 = vmatprep.subr.mxu0 0.0
    %226 = vmatpush2.msra.mxu0 0.0
    %227 = vmatprep.subr.mxu0 0.0
    %228 = vmatpush2.msra.mxu0 0.0
    %229 = vmatprep.subr.mxu0 0.0
    %230 = vmatpush2.msra.mxu0 0.0
    %231 = vmatprep.subr.mxu0 0.0
    %232 = vmatpush2.msra.mxu0 0.0
    %233 = vmatprep.subr.mxu0 0.0
    %234 = vmatpush2.msra.mxu0 0.0
    %235 = vmatprep.subr.mxu0 0.0
    %236 = vmatpush2.msra.mxu0 0.0
    %237 = vmatprep.subr.mxu0 0.0
    %238 = vmatpush2.msra.mxu0 0.0
    %239 = vmatprep.subr.mxu0 0.0
    %240 = vmatpush2.msra.mxu0 0.0
    %241 = vmatprep.subr.mxu0 0.0
    %242 = vmatpush2.msra.mxu0 0.0
    %243 = vmatprep.subr.mxu0 0.0
    %244 = vmatpush2.msra.mxu0 0.0
    %245 = vmatprep.subr.mxu0 0.0
    %246 = vmatpush2.msra.mxu0 0.0
    %247 = vmatprep.subr.mxu0 0.0
    %248 = vmatpush2.msra.mxu0 0.0
    %249 = vmatprep.subr.mxu0 0.0
    %250 = vmatpush2.msra.mxu0 0.0
    %251 = vmatprep.mubr.f32.mxu0 0.0
    %252 = vmatmul.mubr.f32.gmra.mxu0 %v172
    %v253 = vpop.f32.mrf.mxu0
    %v254 = vadd.f32 %v152, %v253
    %v255 = vpop.f32.mrf.mxu0
    %256 = vmatprep.mubr.f32.mxu0 0.0
    %257 = vmatmul.mubr.f32.gmra.mxu0 %v175
    %v258 = vpop.f32.mrf.mxu0
    %v259 = vadd.f32 %v157, %v258
    %v260 = vpop.f32.mrf.mxu0
    %261 = vmatprep.mubr.f32.mxu0 0.0
    %262 = vmatmul.mubr.f32.gmra.mxu0 %v178
    %v263 = vpop.f32.mrf.mxu0
    %v264 = vadd.f32 %v162, %v263
    %v265 = vpop.f32.mrf.mxu0
    %266 = vmatprep.mubr.f32.mxu0 0.0
    %267 = vmatmul.mubr.f32.gmra.mxu0 %v181
    %v268 = vpop.f32.mrf.mxu0
    %v269 = vadd.f32 %v167, %v268
    %v270 = vpop.f32.mrf.mxu0
    %271 = vdwg.mxu0
    %v272 = vld [vmem:[%s6] sm:$0xff]
    %v273 = vld [vmem:[%s6 + $0x8] sm:$0xff]
    %v274 = vld [vmem:[%s6 + $0x10] sm:$0xff]
    %v275 = vld [vmem:[%s6 + $0x18] sm:$0xff]
    %277 = vset.pattern.permute.xlu0 0
    %278 = vperm.xlu0 %277, %v272
    %v279 = vpop.permute.xlu0 %278
    %282 = vset.pattern.permute.xlu0 0
    %283 = vperm.xlu0 %282, %v273
    %v284 = vpop.permute.xlu0 %283
    %287 = vset.pattern.permute.xlu0 0
    %288 = vperm.xlu0 %287, %v274
    %v289 = vpop.permute.xlu0 %288
    %292 = vset.pattern.permute.xlu0 0
    %293 = vperm.xlu0 %292, %v275
    %v294 = vpop.permute.xlu0 %293
    %v296 = vadd.f32 %v254, %v279
    %v297 = vadd.f32 %v259, %v284
    %v298 = vadd.f32 %v264, %v289
    %v299 = vadd.f32 %v269, %v294
    %v300 = vld [vmem:[%s7] sm:$0xff]
    %v301 = vld [vmem:[%s7 + $0x8] sm:$0xff]
    %v302 = vld [vmem:[%s7 + $0x10] sm:$0xff]
    %v303 = vld [vmem:[%s7 + $0x18] sm:$0xff]
    %v305 = vsel %vm72, %v300, 0
    %v308 = vsel %vm72, %v301, 0
    %v311 = vsel %vm72, %v302, 0
    %v314 = vsel %vm72, %v303, 0
    %316 = vmatprep.subr.mxu0 0.0
    %317 = vmatpush1.msra.mxu0 0.0
    %318 = vmatprep.subr.mxu0 0.0
    %319 = vmatpush1.msra.mxu0 0.0
    %320 = vmatprep.subr.mxu0 0.0
    %321 = vmatpush1.msra.mxu0 0.0
    %322 = vmatprep.subr.mxu0 0.0
    %323 = vmatpush1.msra.mxu0 0.0
    %324 = vmatprep.subr.mxu0 0.0
    %325 = vmatpush1.msra.mxu0 0.0
    %326 = vmatprep.subr.mxu0 0.0
    %327 = vmatpush1.msra.mxu0 0.0
    %328 = vmatprep.subr.mxu0 0.0
    %329 = vmatpush1.msra.mxu0 0.0
    %330 = vmatprep.subr.mxu0 0.0
    %331 = vmatpush1.msra.mxu0 0.0
    %332 = vmatprep.subr.mxu0 0.0
    %333 = vmatpush1.msra.mxu0 0.0
    %334 = vmatprep.subr.mxu0 0.0
    %335 = vmatpush1.msra.mxu0 0.0
    %336 = vmatprep.subr.mxu0 0.0
    %337 = vmatpush1.msra.mxu0 0.0
    %338 = vmatprep.subr.mxu0 0.0
    %339 = vmatpush1.msra.mxu0 0.0
    %340 = vmatprep.subr.mxu0 0.0
    %341 = vmatpush1.msra.mxu0 %v299
    %342 = vmatprep.subr.mxu0 0.0
    %343 = vmatpush1.msra.mxu0 %v298
    %344 = vmatprep.subr.mxu0 0.0
    %345 = vmatpush1.msra.mxu0 %v297
    %346 = vmatprep.subr.mxu0 0.0
    %347 = vmatpush1.msra.mxu0 %v296
    %348 = vmatprep.subr.mxu0 0.0
    %349 = vmatpush2.msra.mxu0 0.0
    %350 = vmatprep.subr.mxu0 0.0
    %351 = vmatpush2.msra.mxu0 0.0
    %352 = vmatprep.subr.mxu0 0.0
    %353 = vmatpush2.msra.mxu0 0.0
    %354 = vmatprep.subr.mxu0 0.0
    %355 = vmatpush2.msra.mxu0 0.0
    %356 = vmatprep.subr.mxu0 0.0
    %357 = vmatpush2.msra.mxu0 0.0
    %358 = vmatprep.subr.mxu0 0.0
    %359 = vmatpush2.msra.mxu0 0.0
    %360 = vmatprep.subr.mxu0 0.0
    %361 = vmatpush2.msra.mxu0 0.0
    %362 = vmatprep.subr.mxu0 0.0
    %363 = vmatpush2.msra.mxu0 0.0
    %364 = vmatprep.subr.mxu0 0.0
    %365 = vmatpush2.msra.mxu0 0.0
    %366 = vmatprep.subr.mxu0 0.0
    %367 = vmatpush2.msra.mxu0 0.0
    %368 = vmatprep.subr.mxu0 0.0
    %369 = vmatpush2.msra.mxu0 0.0
    %370 = vmatprep.subr.mxu0 0.0
    %371 = vmatpush2.msra.mxu0 0.0
    %372 = vmatprep.subr.mxu0 0.0
    %373 = vmatpush2.msra.mxu0 0.0
    %374 = vmatprep.subr.mxu0 0.0
    %375 = vmatpush2.msra.mxu0 0.0
    %376 = vmatprep.subr.mxu0 0.0
    %377 = vmatpush2.msra.mxu0 0.0
    %378 = vmatprep.subr.mxu0 0.0
    %379 = vmatpush2.msra.mxu0 0.0
    %380 = vmatprep.mubr.f32.mxu0 0.0
    %381 = vmatmul.mubr.f32.gmra.mxu0 %v305
    %v382 = vpop.f32.mrf.mxu0
    %v383 = vadd.f32 0.0, %v382
    %v384 = vpop.f32.mrf.mxu0
    %385 = vmatprep.mubr.f32.mxu0 0.0
    %386 = vmatmul.mubr.f32.gmra.mxu0 %v308
    %v387 = vpop.f32.mrf.mxu0
    %v388 = vadd.f32 0.0, %v387
    %v389 = vpop.f32.mrf.mxu0
    %390 = vmatprep.mubr.f32.mxu0 0.0
    %391 = vmatmul.mubr.f32.gmra.mxu0 %v311
    %v392 = vpop.f32.mrf.mxu0
    %v393 = vadd.f32 0.0, %v392
    %v394 = vpop.f32.mrf.mxu0
    %395 = vmatprep.mubr.f32.mxu0 0.0
    %396 = vmatmul.mubr.f32.gmra.mxu0 %v314
    %v397 = vpop.f32.mrf.mxu0
    %v398 = vadd.f32 0.0, %v397
    %v399 = vpop.f32.mrf.mxu0
    %400 = vdwg.mxu0
    %v401 = vld [vmem:[%s3] sm:$0xff]
    %v402 = vld [vmem:[%s3 + $0x8] sm:$0xff]
    %s403 = scalar_lea.vmem %s7, 32
    %v404 = vld [vmem:[%s403] sm:$0xff]
    %v405 = vld [vmem:[%s403 + $0x8] sm:$0xff]
    %v406 = vld [vmem:[%s403 + $0x10] sm:$0xff]
    %v407 = vld [vmem:[%s403 + $0x18] sm:$0xff]
    %v409 = vsel %vm72, %v404, 0
    %v412 = vsel %vm72, %v405, 0
    %v415 = vsel %vm72, %v406, 0
    %v418 = vsel %vm72, %v407, 0
    %420 = vmatprep.subr.mxu0 0.0
    %421 = vmatpush1.msra.mxu0 0.0
    %422 = vmatprep.subr.mxu0 0.0
    %423 = vmatpush1.msra.mxu0 0.0
    %424 = vmatprep.subr.mxu0 0.0
    %425 = vmatpush1.msra.mxu0 0.0
    %426 = vmatprep.subr.mxu0 0.0
    %427 = vmatpush1.msra.mxu0 0.0
    %428 = vmatprep.subr.mxu0 0.0
    %429 = vmatpush1.msra.mxu0 0.0
    %430 = vmatprep.subr.mxu0 0.0
    %431 = vmatpush1.msra.mxu0 0.0
    %432 = vmatprep.subr.mxu0 0.0
    %433 = vmatpush1.msra.mxu0 0.0
    %434 = vmatprep.subr.mxu0 0.0
    %435 = vmatpush1.msra.mxu0 0.0
    %436 = vmatprep.subr.mxu0 0.0
    %437 = vmatpush1.msra.mxu0 0.0
    %438 = vmatprep.subr.mxu0 0.0
    %439 = vmatpush1.msra.mxu0 0.0
    %440 = vmatprep.subr.mxu0 0.0
    %441 = vmatpush1.msra.mxu0 0.0
    %442 = vmatprep.subr.mxu0 0.0
    %443 = vmatpush1.msra.mxu0 0.0
    %444 = vmatprep.subr.mxu0 0.0
    %445 = vmatpush1.msra.mxu0 %v299
    %446 = vmatprep.subr.mxu0 0.0
    %447 = vmatpush1.msra.mxu0 %v298
    %448 = vmatprep.subr.mxu0 0.0
    %449 = vmatpush1.msra.mxu0 %v297
    %450 = vmatprep.subr.mxu0 0.0
    %451 = vmatpush1.msra.mxu0 %v296
    %452 = vmatprep.subr.mxu0 0.0
    %453 = vmatpush2.msra.mxu0 0.0
    %454 = vmatprep.subr.mxu0 0.0
    %455 = vmatpush2.msra.mxu0 0.0
    %456 = vmatprep.subr.mxu0 0.0
    %457 = vmatpush2.msra.mxu0 0.0
    %458 = vmatprep.subr.mxu0 0.0
    %459 = vmatpush2.msra.mxu0 0.0
    %460 = vmatprep.subr.mxu0 0.0
    %461 = vmatpush2.msra.mxu0 0.0
    %462 = vmatprep.subr.mxu0 0.0
    %463 = vmatpush2.msra.mxu0 0.0
    %464 = vmatprep.subr.mxu0 0.0
    %465 = vmatpush2.msra.mxu0 0.0
    %466 = vmatprep.subr.mxu0 0.0
    %467 = vmatpush2.msra.mxu0 0.0
    %468 = vmatprep.subr.mxu0 0.0
    %469 = vmatpush2.msra.mxu0 0.0
    %470 = vmatprep.subr.mxu0 0.0
    %471 = vmatpush2.msra.mxu0 0.0
    %472 = vmatprep.subr.mxu0 0.0
    %473 = vmatpush2.msra.mxu0 0.0
    %474 = vmatprep.subr.mxu0 0.0
    %475 = vmatpush2.msra.mxu0 0.0
    %476 = vmatprep.subr.mxu0 0.0
    %477 = vmatpush2.msra.mxu0 0.0
    %478 = vmatprep.subr.mxu0 0.0
    %479 = vmatpush2.msra.mxu0 0.0
    %480 = vmatprep.subr.mxu0 0.0
    %481 = vmatpush2.msra.mxu0 0.0
    %482 = vmatprep.subr.mxu0 0.0
    %483 = vmatpush2.msra.mxu0 0.0
    %484 = vmatprep.mubr.f32.mxu0 0.0
    %485 = vmatmul.mubr.f32.gmra.mxu0 %v409
    %v486 = vpop.f32.mrf.mxu0
    %v487 = vadd.f32 0.0, %v486
    %v488 = vpop.f32.mrf.mxu0
    %489 = vmatprep.mubr.f32.mxu0 0.0
    %490 = vmatmul.mubr.f32.gmra.mxu0 %v412
    %v491 = vpop.f32.mrf.mxu0
    %v492 = vadd.f32 0.0, %v491
    %v493 = vpop.f32.mrf.mxu0
    %494 = vmatprep.mubr.f32.mxu0 0.0
    %495 = vmatmul.mubr.f32.gmra.mxu0 %v415
    %v496 = vpop.f32.mrf.mxu0
    %v497 = vadd.f32 0.0, %v496
    %v498 = vpop.f32.mrf.mxu0
    %499 = vmatprep.mubr.f32.mxu0 0.0
    %500 = vmatmul.mubr.f32.gmra.mxu0 %v418
    %v501 = vpop.f32.mrf.mxu0
    %v502 = vadd.f32 0.0, %v501
    %v503 = vpop.f32.mrf.mxu0
    %504 = vdwg.mxu0
    %s505 = scalar_lea.vmem %s3, 16
    %v506 = vld [vmem:[%s505] sm:$0xff]
    %v507 = vld [vmem:[%s505 + $0x8] sm:$0xff]
    %vm508 = vcmask 130048
    %v510 = vsel %vm508, %v487, 0
    %v513 = vsel %vm508, %v492, 0
    %v516 = vsel %vm508, %v497, 0
    %v519 = vsel %vm508, %v502, 0
    %521 = vmatprep.subr.mxu0 0.0
    %522 = vmatpush1.msra.mxu0 0.0
    %523 = vmatprep.subr.mxu0 0.0
    %524 = vmatpush1.msra.mxu0 0.0
    %525 = vmatprep.subr.mxu0 0.0
    %526 = vmatpush1.msra.mxu0 0.0
    %527 = vmatprep.subr.mxu0 0.0
    %528 = vmatpush1.msra.mxu0 0.0
    %529 = vmatprep.subr.mxu0 0.0
    %530 = vmatpush1.msra.mxu0 0.0
    %531 = vmatprep.subr.mxu0 0.0
    %532 = vmatpush1.msra.mxu0 0.0
    %533 = vmatprep.subr.mxu0 0.0
    %534 = vmatpush1.msra.mxu0 0.0
    %535 = vmatprep.subr.mxu0 0.0
    %536 = vmatpush1.msra.mxu0 0.0
    %537 = vmatprep.subr.mxu0 0.0
    %538 = vmatpush1.msra.mxu0 0.0
    %539 = vmatprep.subr.mxu0 0.0
    %540 = vmatpush1.msra.mxu0 0.0
    %541 = vmatprep.subr.mxu0 0.0
    %542 = vmatpush1.msra.mxu0 0.0
    %543 = vmatprep.subr.mxu0 0.0
    %544 = vmatpush1.msra.mxu0 0.0
    %545 = vmatprep.subr.mxu0 0.0
    %546 = vmatpush1.msra.mxu0 0.0
    %547 = vmatprep.subr.mxu0 0.0
    %548 = vmatpush1.msra.mxu0 0.0
    %549 = vmatprep.subr.mxu0 0.0
    %550 = vmatpush1.msra.mxu0 %v507
    %551 = vmatprep.subr.mxu0 0.0
    %552 = vmatpush1.msra.mxu0 %v506
    %553 = vmatprep.subr.mxu0 0.0
    %554 = vmatpush2.msra.mxu0 0.0
    %555 = vmatprep.subr.mxu0 0.0
    %556 = vmatpush2.msra.mxu0 0.0
    %557 = vmatprep.subr.mxu0 0.0
    %558 = vmatpush2.msra.mxu0 0.0
    %559 = vmatprep.subr.mxu0 0.0
    %560 = vmatpush2.msra.mxu0 0.0
    %561 = vmatprep.subr.mxu0 0.0
    %562 = vmatpush2.msra.mxu0 0.0
    %563 = vmatprep.subr.mxu0 0.0
    %564 = vmatpush2.msra.mxu0 0.0
    %565 = vmatprep.subr.mxu0 0.0
    %566 = vmatpush2.msra.mxu0 0.0
    %567 = vmatprep.subr.mxu0 0.0
    %568 = vmatpush2.msra.mxu0 0.0
    %569 = vmatprep.subr.mxu0 0.0
    %570 = vmatpush2.msra.mxu0 0.0
    %571 = vmatprep.subr.mxu0 0.0
    %572 = vmatpush2.msra.mxu0 0.0
    %573 = vmatprep.subr.mxu0 0.0
    %574 = vmatpush2.msra.mxu0 0.0
    %575 = vmatprep.subr.mxu0 0.0
    %576 = vmatpush2.msra.mxu0 0.0
    %577 = vmatprep.subr.mxu0 0.0
    %578 = vmatpush2.msra.mxu0 0.0
    %579 = vmatprep.subr.mxu0 0.0
    %580 = vmatpush2.msra.mxu0 0.0
    %581 = vmatprep.subr.mxu0 0.0
    %582 = vmatpush2.msra.mxu0 0.0
    %583 = vmatprep.subr.mxu0 0.0
    %584 = vmatpush2.msra.mxu0 0.0
    %585 = vmatprep.mubr.f32.mxu0 0.0
    %586 = vmatmul.mubr.f32.gmra.mxu0 %v510
    %v587 = vpop.f32.mrf.mxu0
    %v588 = vadd.f32 0.0, %v587
    %v589 = vpop.f32.mrf.mxu0
    %590 = vmatprep.mubr.f32.mxu0 0.0
    %591 = vmatmul.mubr.f32.gmra.mxu0 %v513
    %v592 = vpop.f32.mrf.mxu0
    %v593 = vadd.f32 0.0, %v592
    %v594 = vpop.f32.mrf.mxu0
    %595 = vmatprep.mubr.f32.mxu0 0.0
    %596 = vmatmul.mubr.f32.gmra.mxu0 %v516
    %v597 = vpop.f32.mrf.mxu0
    %v598 = vadd.f32 0.0, %v597
    %v599 = vpop.f32.mrf.mxu0
    %600 = vmatprep.mubr.f32.mxu0 0.0
    %601 = vmatmul.mubr.f32.gmra.mxu0 %v519
    %v602 = vpop.f32.mrf.mxu0
    %v603 = vadd.f32 0.0, %v602
    %v604 = vpop.f32.mrf.mxu0
    %605 = vdwg.mxu0
    %v607 = vsel %vm508, %v383, 0
    %v610 = vsel %vm508, %v388, 0
    %v613 = vsel %vm508, %v393, 0
    %v616 = vsel %vm508, %v398, 0
    %618 = vmatprep.subr.mxu0 0.0
    %619 = vmatpush1.msra.mxu0 0.0
    %620 = vmatprep.subr.mxu0 0.0
    %621 = vmatpush1.msra.mxu0 0.0
    %622 = vmatprep.subr.mxu0 0.0
    %623 = vmatpush1.msra.mxu0 0.0
    %624 = vmatprep.subr.mxu0 0.0
    %625 = vmatpush1.msra.mxu0 0.0
    %626 = vmatprep.subr.mxu0 0.0
    %627 = vmatpush1.msra.mxu0 0.0
    %628 = vmatprep.subr.mxu0 0.0
    %629 = vmatpush1.msra.mxu0 0.0
    %630 = vmatprep.subr.mxu0 0.0
    %631 = vmatpush1.msra.mxu0 0.0
    %632 = vmatprep.subr.mxu0 0.0
    %633 = vmatpush1.msra.mxu0 0.0
    %634 = vmatprep.subr.mxu0 0.0
    %635 = vmatpush1.msra.mxu0 0.0
    %636 = vmatprep.subr.mxu0 0.0
    %637 = vmatpush1.msra.mxu0 0.0
    %638 = vmatprep.subr.mxu0 0.0
    %639 = vmatpush1.msra.mxu0 0.0
    %640 = vmatprep.subr.mxu0 0.0
    %641 = vmatpush1.msra.mxu0 0.0
    %642 = vmatprep.subr.mxu0 0.0
    %643 = vmatpush1.msra.mxu0 0.0
    %644 = vmatprep.subr.mxu0 0.0
    %645 = vmatpush1.msra.mxu0 0.0
    %646 = vmatprep.subr.mxu0 0.0
    %647 = vmatpush1.msra.mxu0 %v402
    %648 = vmatprep.subr.mxu0 0.0
    %649 = vmatpush1.msra.mxu0 %v401
    %650 = vmatprep.subr.mxu0 0.0
    %651 = vmatpush2.msra.mxu0 0.0
    %652 = vmatprep.subr.mxu0 0.0
    %653 = vmatpush2.msra.mxu0 0.0
    %654 = vmatprep.subr.mxu0 0.0
    %655 = vmatpush2.msra.mxu0 0.0
    %656 = vmatprep.subr.mxu0 0.0
    %657 = vmatpush2.msra.mxu0 0.0
    %658 = vmatprep.subr.mxu0 0.0
    %659 = vmatpush2.msra.mxu0 0.0
    %660 = vmatprep.subr.mxu0 0.0
    %661 = vmatpush2.msra.mxu0 0.0
    %662 = vmatprep.subr.mxu0 0.0
    %663 = vmatpush2.msra.mxu0 0.0
    %664 = vmatprep.subr.mxu0 0.0
    %665 = vmatpush2.msra.mxu0 0.0
    %666 = vmatprep.subr.mxu0 0.0
    %667 = vmatpush2.msra.mxu0 0.0
    %668 = vmatprep.subr.mxu0 0.0
    %669 = vmatpush2.msra.mxu0 0.0
    %670 = vmatprep.subr.mxu0 0.0
    %671 = vmatpush2.msra.mxu0 0.0
    %672 = vmatprep.subr.mxu0 0.0
    %673 = vmatpush2.msra.mxu0 0.0
    %674 = vmatprep.subr.mxu0 0.0
    %675 = vmatpush2.msra.mxu0 0.0
    %676 = vmatprep.subr.mxu0 0.0
    %677 = vmatpush2.msra.mxu0 0.0
    %678 = vmatprep.subr.mxu0 0.0
    %679 = vmatpush2.msra.mxu0 0.0
    %680 = vmatprep.subr.mxu0 0.0
    %681 = vmatpush2.msra.mxu0 0.0
    %682 = vmatprep.mubr.f32.mxu0 0.0
    %683 = vmatmul.mubr.f32.gmra.mxu0 %v607
    %v684 = vpop.f32.mrf.mxu0
    %v685 = vadd.f32 %v588, %v684
    %v686 = vpop.f32.mrf.mxu0
    %687 = vmatprep.mubr.f32.mxu0 0.0
    %688 = vmatmul.mubr.f32.gmra.mxu0 %v610
    %v689 = vpop.f32.mrf.mxu0
    %v690 = vadd.f32 %v593, %v689
    %v691 = vpop.f32.mrf.mxu0
    %692 = vmatprep.mubr.f32.mxu0 0.0
    %693 = vmatmul.mubr.f32.gmra.mxu0 %v613
    %v694 = vpop.f32.mrf.mxu0
    %v695 = vadd.f32 %v598, %v694
    %v696 = vpop.f32.mrf.mxu0
    %697 = vmatprep.mubr.f32.mxu0 0.0
    %698 = vmatmul.mubr.f32.gmra.mxu0 %v616
    %v699 = vpop.f32.mrf.mxu0
    %v700 = vadd.f32 %v603, %v699
    %v701 = vpop.f32.mrf.mxu0
    %702 = vdwg.mxu0
    %v703 = vld [vmem:[%s8] sm:$0xff]
    %v704 = vld [vmem:[%s8 + $0x8] sm:$0xff]
    %v705 = vld [vmem:[%s8 + $0x10] sm:$0xff]
    %v706 = vld [vmem:[%s8 + $0x18] sm:$0xff]
    %708 = vset.pattern.permute.xlu0 0
    %709 = vperm.xlu0 %708, %v703
    %v710 = vpop.permute.xlu0 %709
    %713 = vset.pattern.permute.xlu0 0
    %714 = vperm.xlu0 %713, %v704
    %v715 = vpop.permute.xlu0 %714
    %718 = vset.pattern.permute.xlu0 0
    %719 = vperm.xlu0 %718, %v705
    %v720 = vpop.permute.xlu0 %719
    %723 = vset.pattern.permute.xlu0 0
    %724 = vperm.xlu0 %723, %v706
    %v725 = vpop.permute.xlu0 %724
    %v727 = vadd.f32 %v685, %v710
    %v728 = vadd.f32 %v690, %v715
    %v729 = vadd.f32 %v695, %v720
    %v730 = vadd.f32 %v700, %v725
    %v731 = vld [vmem:[%s2] sm:$0xff]
    %v732 = vld [vmem:[%s2 + $0x8] sm:$0xff]
    %v733 = vld [vmem:[%s2 + $0x10] sm:$0xff]
    %v734 = vld [vmem:[%s2 + $0x18] sm:$0xff]
    %v735 = vld [vmem:[%s9] sm:$0xff]
    %v736 = vld [vmem:[%s9 + $0x8] sm:$0xff]
    %v737 = vld [vmem:[%s9 + $0x10] sm:$0xff]
    %v738 = vld [vmem:[%s9 + $0x18] sm:$0xff]
    %v739 = vld [vmem:[%s10] sm:$0xff]
    %v740 = vld [vmem:[%s10 + $0x8] sm:$0xff]
    %v741 = vld [vmem:[%s10 + $0x10] sm:$0xff]
    %v742 = vld [vmem:[%s10 + $0x18] sm:$0xff]
    %v744 = vsel %vm72, %v739, 0
    %v747 = vsel %vm72, %v740, 0
    %v750 = vsel %vm72, %v741, 0
    %v753 = vsel %vm72, %v742, 0
    %755 = vmatprep.subr.mxu0 0.0
    %756 = vmatpush1.msra.mxu0 0.0
    %757 = vmatprep.subr.mxu0 0.0
    %758 = vmatpush1.msra.mxu0 0.0
    %759 = vmatprep.subr.mxu0 0.0
    %760 = vmatpush1.msra.mxu0 0.0
    %761 = vmatprep.subr.mxu0 0.0
    %762 = vmatpush1.msra.mxu0 0.0
    %763 = vmatprep.subr.mxu0 0.0
    %764 = vmatpush1.msra.mxu0 0.0
    %765 = vmatprep.subr.mxu0 0.0
    %766 = vmatpush1.msra.mxu0 0.0
    %767 = vmatprep.subr.mxu0 0.0
    %768 = vmatpush1.msra.mxu0 0.0
    %769 = vmatprep.subr.mxu0 0.0
    %770 = vmatpush1.msra.mxu0 0.0
    %771 = vmatprep.subr.mxu0 0.0
    %772 = vmatpush1.msra.mxu0 0.0
    %773 = vmatprep.subr.mxu0 0.0
    %774 = vmatpush1.msra.mxu0 0.0
    %775 = vmatprep.subr.mxu0 0.0
    %776 = vmatpush1.msra.mxu0 0.0
    %777 = vmatprep.subr.mxu0 0.0
    %778 = vmatpush1.msra.mxu0 0.0
    %779 = vmatprep.subr.mxu0 0.0
    %780 = vmatpush1.msra.mxu0 %v734
    %781 = vmatprep.subr.mxu0 0.0
    %782 = vmatpush1.msra.mxu0 %v733
    %783 = vmatprep.subr.mxu0 0.0
    %784 = vmatpush1.msra.mxu0 %v732
    %785 = vmatprep.subr.mxu0 0.0
    %786 = vmatpush1.msra.mxu0 %v731
    %787 = vmatprep.subr.mxu0 0.0
    %788 = vmatpush2.msra.mxu0 0.0
    %789 = vmatprep.subr.mxu0 0.0
    %790 = vmatpush2.msra.mxu0 0.0
    %791 = vmatprep.subr.mxu0 0.0
    %792 = vmatpush2.msra.mxu0 0.0
    %793 = vmatprep.subr.mxu0 0.0
    %794 = vmatpush2.msra.mxu0 0.0
    %795 = vmatprep.subr.mxu0 0.0
    %796 = vmatpush2.msra.mxu0 0.0
    %797 = vmatprep.subr.mxu0 0.0
    %798 = vmatpush2.msra.mxu0 0.0
    %799 = vmatprep.subr.mxu0 0.0
    %800 = vmatpush2.msra.mxu0 0.0
    %801 = vmatprep.subr.mxu0 0.0
    %802 = vmatpush2.msra.mxu0 0.0
    %803 = vmatprep.subr.mxu0 0.0
    %804 = vmatpush2.msra.mxu0 0.0
    %805 = vmatprep.subr.mxu0 0.0
    %806 = vmatpush2.msra.mxu0 0.0
    %807 = vmatprep.subr.mxu0 0.0
    %808 = vmatpush2.msra.mxu0 0.0
    %809 = vmatprep.subr.mxu0 0.0
    %810 = vmatpush2.msra.mxu0 0.0
    %811 = vmatprep.subr.mxu0 0.0
    %812 = vmatpush2.msra.mxu0 0.0
    %813 = vmatprep.subr.mxu0 0.0
    %814 = vmatpush2.msra.mxu0 0.0
    %815 = vmatprep.subr.mxu0 0.0
    %816 = vmatpush2.msra.mxu0 0.0
    %817 = vmatprep.subr.mxu0 0.0
    %818 = vmatpush2.msra.mxu0 0.0
    %819 = vmatprep.mubr.f32.mxu0 0.0
    %820 = vmatmul.mubr.f32.gmra.mxu0 %v744
    %v821 = vpop.f32.mrf.mxu0
    %v822 = vadd.f32 0.0, %v821
    %v823 = vpop.f32.mrf.mxu0
    %824 = vmatprep.mubr.f32.mxu0 0.0
    %825 = vmatmul.mubr.f32.gmra.mxu0 %v747
    %v826 = vpop.f32.mrf.mxu0
    %v827 = vadd.f32 0.0, %v826
    %v828 = vpop.f32.mrf.mxu0
    %829 = vmatprep.mubr.f32.mxu0 0.0
    %830 = vmatmul.mubr.f32.gmra.mxu0 %v750
    %v831 = vpop.f32.mrf.mxu0
    %v832 = vadd.f32 0.0, %v831
    %v833 = vpop.f32.mrf.mxu0
    %834 = vmatprep.mubr.f32.mxu0 0.0
    %835 = vmatmul.mubr.f32.gmra.mxu0 %v753
    %v836 = vpop.f32.mrf.mxu0
    %v837 = vadd.f32 0.0, %v836
    %v838 = vpop.f32.mrf.mxu0
    %839 = vdwg.mxu0
    %v841 = vsel %vm72, %v735, 0
    %v844 = vsel %vm72, %v736, 0
    %v847 = vsel %vm72, %v737, 0
    %v850 = vsel %vm72, %v738, 0
    %852 = vmatprep.subr.mxu0 0.0
    %853 = vmatpush1.msra.mxu0 0.0
    %854 = vmatprep.subr.mxu0 0.0
    %855 = vmatpush1.msra.mxu0 0.0
    %856 = vmatprep.subr.mxu0 0.0
    %857 = vmatpush1.msra.mxu0 0.0
    %858 = vmatprep.subr.mxu0 0.0
    %859 = vmatpush1.msra.mxu0 0.0
    %860 = vmatprep.subr.mxu0 0.0
    %861 = vmatpush1.msra.mxu0 0.0
    %862 = vmatprep.subr.mxu0 0.0
    %863 = vmatpush1.msra.mxu0 0.0
    %864 = vmatprep.subr.mxu0 0.0
    %865 = vmatpush1.msra.mxu0 0.0
    %866 = vmatprep.subr.mxu0 0.0
    %867 = vmatpush1.msra.mxu0 0.0
    %868 = vmatprep.subr.mxu0 0.0
    %869 = vmatpush1.msra.mxu0 0.0
    %870 = vmatprep.subr.mxu0 0.0
    %871 = vmatpush1.msra.mxu0 0.0
    %872 = vmatprep.subr.mxu0 0.0
    %873 = vmatpush1.msra.mxu0 0.0
    %874 = vmatprep.subr.mxu0 0.0
    %875 = vmatpush1.msra.mxu0 0.0
    %876 = vmatprep.subr.mxu0 0.0
    %877 = vmatpush1.msra.mxu0 %v730
    %878 = vmatprep.subr.mxu0 0.0
    %879 = vmatpush1.msra.mxu0 %v729
    %880 = vmatprep.subr.mxu0 0.0
    %881 = vmatpush1.msra.mxu0 %v728
    %882 = vmatprep.subr.mxu0 0.0
    %883 = vmatpush1.msra.mxu0 %v727
    %884 = vmatprep.subr.mxu0 0.0
    %885 = vmatpush2.msra.mxu0 0.0
    %886 = vmatprep.subr.mxu0 0.0
    %887 = vmatpush2.msra.mxu0 0.0
    %888 = vmatprep.subr.mxu0 0.0
    %889 = vmatpush2.msra.mxu0 0.0
    %890 = vmatprep.subr.mxu0 0.0
    %891 = vmatpush2.msra.mxu0 0.0
    %892 = vmatprep.subr.mxu0 0.0
    %893 = vmatpush2.msra.mxu0 0.0
    %894 = vmatprep.subr.mxu0 0.0
    %895 = vmatpush2.msra.mxu0 0.0
    %896 = vmatprep.subr.mxu0 0.0
    %897 = vmatpush2.msra.mxu0 0.0
    %898 = vmatprep.subr.mxu0 0.0
    %899 = vmatpush2.msra.mxu0 0.0
    %900 = vmatprep.subr.mxu0 0.0
    %901 = vmatpush2.msra.mxu0 0.0
    %902 = vmatprep.subr.mxu0 0.0
    %903 = vmatpush2.msra.mxu0 0.0
    %904 = vmatprep.subr.mxu0 0.0
    %905 = vmatpush2.msra.mxu0 0.0
    %906 = vmatprep.subr.mxu0 0.0
    %907 = vmatpush2.msra.mxu0 0.0
    %908 = vmatprep.subr.mxu0 0.0
    %909 = vmatpush2.msra.mxu0 0.0
    %910 = vmatprep.subr.mxu0 0.0
    %911 = vmatpush2.msra.mxu0 0.0
    %912 = vmatprep.subr.mxu0 0.0
    %913 = vmatpush2.msra.mxu0 0.0
    %914 = vmatprep.subr.mxu0 0.0
    %915 = vmatpush2.msra.mxu0 0.0
    %916 = vmatprep.mubr.f32.mxu0 0.0
    %917 = vmatmul.mubr.f32.gmra.mxu0 %v841
    %v918 = vpop.f32.mrf.mxu0
    %v919 = vadd.f32 %v822, %v918
    %v920 = vpop.f32.mrf.mxu0
    %921 = vmatprep.mubr.f32.mxu0 0.0
    %922 = vmatmul.mubr.f32.gmra.mxu0 %v844
    %v923 = vpop.f32.mrf.mxu0
    %v924 = vadd.f32 %v827, %v923
    %v925 = vpop.f32.mrf.mxu0
    %926 = vmatprep.mubr.f32.mxu0 0.0
    %927 = vmatmul.mubr.f32.gmra.mxu0 %v847
    %v928 = vpop.f32.mrf.mxu0
    %v929 = vadd.f32 %v832, %v928
    %v930 = vpop.f32.mrf.mxu0
    %931 = vmatprep.mubr.f32.mxu0 0.0
    %932 = vmatmul.mubr.f32.gmra.mxu0 %v850
    %v933 = vpop.f32.mrf.mxu0
    %v934 = vadd.f32 %v837, %v933
    %v935 = vpop.f32.mrf.mxu0
    %936 = vdwg.mxu0
    %v937 = vld [vmem:[%s11] sm:$0xff]
    %v938 = vld [vmem:[%s11 + $0x8] sm:$0xff]
    %v939 = vld [vmem:[%s11 + $0x10] sm:$0xff]
    %v940 = vld [vmem:[%s11 + $0x18] sm:$0xff]
    %942 = vset.pattern.permute.xlu0 0
    %943 = vperm.xlu0 %942, %v937
    %v944 = vpop.permute.xlu0 %943
    %947 = vset.pattern.permute.xlu0 0
    %948 = vperm.xlu0 %947, %v938
    %v949 = vpop.permute.xlu0 %948
    %952 = vset.pattern.permute.xlu0 0
    %953 = vperm.xlu0 %952, %v939
    %v954 = vpop.permute.xlu0 %953
    %957 = vset.pattern.permute.xlu0 0
    %958 = vperm.xlu0 %957, %v940
    %v959 = vpop.permute.xlu0 %958
    %v961 = vadd.f32 %v919, %v944
    %v962 = vadd.f32 %v924, %v949
    %v963 = vadd.f32 %v929, %v954
    %v964 = vadd.f32 %v934, %v959
    %vm965 = vcmp.gt.f32.partialorder %v961, 0.0
    %vm966 = vcmp.gt.f32.partialorder %v962, 0.0
    %vm967 = vcmp.gt.f32.partialorder %v963, 0.0
    %vm968 = vcmp.gt.f32.partialorder %v964, 0.0
    %v969 = vstv %s57
    %v970 = vmul.f32 %v969, %v961
    %v971 = vmul.f32 %v969, %v962
    %v972 = vmul.f32 %v969, %v963
    %v973 = vmul.f32 %v969, %v964
    %v974 = vsel %vm965, %v961, %v970
    %v975 = vsel %vm966, %v962, %v971
    %v976 = vsel %vm967, %v963, %v972
    %v977 = vsel %vm968, %v964, %v973
    %978 = vst.msk [vmem:[%s17] sm:$0xff] %vm508, %v974
    %979 = vst.msk [vmem:[%s17 + $0x8] sm:$0xff] %vm508, %v975
    %980 = vst.msk [vmem:[%s17 + $0x10] sm:$0xff] %vm508, %v976
    %981 = vst.msk [vmem:[%s17 + $0x18] sm:$0xff] %vm508, %v977
    %982 = vst.msk [vmem:[%s17 + $0x20] sm:$0xff] %vm508, %v731
    %983 = vst.msk [vmem:[%s17 + $0x28] sm:$0xff] %vm508, %v732
    %984 = vst.msk [vmem:[%s17 + $0x30] sm:$0xff] %vm508, %v733
    %985 = vst.msk [vmem:[%s17 + $0x38] sm:$0xff] %vm508, %v734
    %v986 = vld [vmem:[%s12] sm:$0xf]
    %v987 = vld [vmem:[%s13] sm:$0xf]
    %v989 = vsel %vm72, %v987, 0
    %991 = vmatprep.subr.mxu0 0.0
    %992 = vmatpush1.msra.mxu0 0.0
    %993 = vmatprep.subr.mxu0 0.0
    %994 = vmatpush1.msra.mxu0 0.0
    %995 = vmatprep.subr.mxu0 0.0
    %996 = vmatpush1.msra.mxu0 0.0
    %997 = vmatprep.subr.mxu0 0.0
    %998 = vmatpush1.msra.mxu0 0.0
    %999 = vmatprep.subr.mxu0 0.0
    %1000 = vmatpush1.msra.mxu0 0.0
    %1001 = vmatprep.subr.mxu0 0.0
    %1002 = vmatpush1.msra.mxu0 0.0
    %1003 = vmatprep.subr.mxu0 0.0
    %1004 = vmatpush1.msra.mxu0 0.0
    %1005 = vmatprep.subr.mxu0 0.0
    %1006 = vmatpush1.msra.mxu0 0.0
    %1007 = vmatprep.subr.mxu0 0.0
    %1008 = vmatpush1.msra.mxu0 0.0
    %1009 = vmatprep.subr.mxu0 0.0
    %1010 = vmatpush1.msra.mxu0 0.0
    %1011 = vmatprep.subr.mxu0 0.0
    %1012 = vmatpush1.msra.mxu0 0.0
    %1013 = vmatprep.subr.mxu0 0.0
    %1014 = vmatpush1.msra.mxu0 0.0
    %1015 = vmatprep.subr.mxu0 0.0
    %1016 = vmatpush1.msra.mxu0 %v734
    %1017 = vmatprep.subr.mxu0 0.0
    %1018 = vmatpush1.msra.mxu0 %v733
    %1019 = vmatprep.subr.mxu0 0.0
    %1020 = vmatpush1.msra.mxu0 %v732
    %1021 = vmatprep.subr.mxu0 0.0
    %1022 = vmatpush1.msra.mxu0 %v731
    %1023 = vmatprep.subr.mxu0 0.0
    %1024 = vmatpush2.msra.mxu0 0.0
    %1025 = vmatprep.subr.mxu0 0.0
    %1026 = vmatpush2.msra.mxu0 0.0
    %1027 = vmatprep.subr.mxu0 0.0
    %1028 = vmatpush2.msra.mxu0 0.0
    %1029 = vmatprep.subr.mxu0 0.0
    %1030 = vmatpush2.msra.mxu0 0.0
    %1031 = vmatprep.subr.mxu0 0.0
    %1032 = vmatpush2.msra.mxu0 0.0
    %1033 = vmatprep.subr.mxu0 0.0
    %1034 = vmatpush2.msra.mxu0 0.0
    %1035 = vmatprep.subr.mxu0 0.0
    %1036 = vmatpush2.msra.mxu0 0.0
    %1037 = vmatprep.subr.mxu0 0.0
    %1038 = vmatpush2.msra.mxu0 0.0
    %1039 = vmatprep.subr.mxu0 0.0
    %1040 = vmatpush2.msra.mxu0 0.0
    %1041 = vmatprep.subr.mxu0 0.0
    %1042 = vmatpush2.msra.mxu0 0.0
    %1043 = vmatprep.subr.mxu0 0.0
    %1044 = vmatpush2.msra.mxu0 0.0
    %1045 = vmatprep.subr.mxu0 0.0
    %1046 = vmatpush2.msra.mxu0 0.0
    %1047 = vmatprep.subr.mxu0 0.0
    %1048 = vmatpush2.msra.mxu0 0.0
    %1049 = vmatprep.subr.mxu0 0.0
    %1050 = vmatpush2.msra.mxu0 0.0
    %1051 = vmatprep.subr.mxu0 0.0
    %1052 = vmatpush2.msra.mxu0 0.0
    %1053 = vmatprep.subr.mxu0 0.0
    %1054 = vmatpush2.msra.mxu0 0.0
    %1055 = vmatprep.mubr.f32.mxu0 0.0
    %1056 = vmatmul.mubr.f32.gmra.mxu0 %v989
    %v1057 = vpop.f32.mrf.mxu0
    %v1058 = vadd.f32 0.0, %v1057
    %v1059 = vpop.f32.mrf.mxu0
    %1060 = vdwg.mxu0
    %v1062 = vsel %vm72, %v986, 0
    %1064 = vmatprep.subr.mxu0 0.0
    %1065 = vmatpush1.msra.mxu0 0.0
    %1066 = vmatprep.subr.mxu0 0.0
    %1067 = vmatpush1.msra.mxu0 0.0
    %1068 = vmatprep.subr.mxu0 0.0
    %1069 = vmatpush1.msra.mxu0 0.0
    %1070 = vmatprep.subr.mxu0 0.0
    %1071 = vmatpush1.msra.mxu0 0.0
    %1072 = vmatprep.subr.mxu0 0.0
    %1073 = vmatpush1.msra.mxu0 0.0
    %1074 = vmatprep.subr.mxu0 0.0
    %1075 = vmatpush1.msra.mxu0 0.0
    %1076 = vmatprep.subr.mxu0 0.0
    %1077 = vmatpush1.msra.mxu0 0.0
    %1078 = vmatprep.subr.mxu0 0.0
    %1079 = vmatpush1.msra.mxu0 0.0
    %1080 = vmatprep.subr.mxu0 0.0
    %1081 = vmatpush1.msra.mxu0 0.0
    %1082 = vmatprep.subr.mxu0 0.0
    %1083 = vmatpush1.msra.mxu0 0.0
    %1084 = vmatprep.subr.mxu0 0.0
    %1085 = vmatpush1.msra.mxu0 0.0
    %1086 = vmatprep.subr.mxu0 0.0
    %1087 = vmatpush1.msra.mxu0 0.0
    %1088 = vmatprep.subr.mxu0 0.0
    %1089 = vmatpush1.msra.mxu0 %v977
    %1090 = vmatprep.subr.mxu0 0.0
    %1091 = vmatpush1.msra.mxu0 %v976
    %1092 = vmatprep.subr.mxu0 0.0
    %1093 = vmatpush1.msra.mxu0 %v975
    %1094 = vmatprep.subr.mxu0 0.0
    %1095 = vmatpush1.msra.mxu0 %v974
    %1096 = vmatprep.subr.mxu0 0.0
    %1097 = vmatpush2.msra.mxu0 0.0
    %1098 = vmatprep.subr.mxu0 0.0
    %1099 = vmatpush2.msra.mxu0 0.0
    %1100 = vmatprep.subr.mxu0 0.0
    %1101 = vmatpush2.msra.mxu0 0.0
    %1102 = vmatprep.subr.mxu0 0.0
    %1103 = vmatpush2.msra.mxu0 0.0
    %1104 = vmatprep.subr.mxu0 0.0
    %1105 = vmatpush2.msra.mxu0 0.0
    %1106 = vmatprep.subr.mxu0 0.0
    %1107 = vmatpush2.msra.mxu0 0.0
    %1108 = vmatprep.subr.mxu0 0.0
    %1109 = vmatpush2.msra.mxu0 0.0
    %1110 = vmatprep.subr.mxu0 0.0
    %1111 = vmatpush2.msra.mxu0 0.0
    %1112 = vmatprep.subr.mxu0 0.0
    %1113 = vmatpush2.msra.mxu0 0.0
    %1114 = vmatprep.subr.mxu0 0.0
    %1115 = vmatpush2.msra.mxu0 0.0
    %1116 = vmatprep.subr.mxu0 0.0
    %1117 = vmatpush2.msra.mxu0 0.0
    %1118 = vmatprep.subr.mxu0 0.0
    %1119 = vmatpush2.msra.mxu0 0.0
    %1120 = vmatprep.subr.mxu0 0.0
    %1121 = vmatpush2.msra.mxu0 0.0
    %1122 = vmatprep.subr.mxu0 0.0
    %1123 = vmatpush2.msra.mxu0 0.0
    %1124 = vmatprep.subr.mxu0 0.0
    %1125 = vmatpush2.msra.mxu0 0.0
    %1126 = vmatprep.subr.mxu0 0.0
    %1127 = vmatpush2.msra.mxu0 0.0
    %1128 = vmatprep.mubr.f32.mxu0 0.0
    %1129 = vmatmul.mubr.f32.gmra.mxu0 %v1062
    %v1130 = vpop.f32.mrf.mxu0
    %v1131 = vadd.f32 %v1058, %v1130
    %v1132 = vpop.f32.mrf.mxu0
    %1133 = vdwg.mxu0
    %v1134 = vld [vmem:[%s14] sm:$0xf]
    %1136 = vset.pattern.permute.xlu0 0
    %1137 = vperm.xlu0 %1136, %v1134
    %v1138 = vpop.permute.xlu0 %1137
    %v1140 = vadd.f32 %v1131, %v1138
    %vm1141 = vcmask 125952
    %1142 = vst.msk [vmem:[#allocation3] sm:$0xf] %vm1141, %v1140
    %v1143 = vld [vmem:[%s4] sm:$0xff]
    %v1144 = vld [vmem:[%s4 + $0x8] sm:$0xff]
    %v1145 = vld [vmem:[%s4 + $0x10] sm:$0xff]
    %v1146 = vld [vmem:[%s4 + $0x18] sm:$0xff]
    %s1147 = scalar_lea.vmem %s0, 16
    %v1148 = vld [vmem:[%s1147] sm:$0xff]
    %v1149 = vld [vmem:[%s1147 + $0x8] sm:$0xf]
    %v1150 = vld [vmem:[%s5] sm:$0xff]
    %v1151 = vld [vmem:[%s5 + $0x8] sm:$0xff]
    %v1152 = vld [vmem:[%s5 + $0x10] sm:$0xff]
    %v1153 = vld [vmem:[%s5 + $0x18] sm:$0xff]
    %s1154 = scalar_lea.vmem %s1, 32
    %v1155 = vld [vmem:[%s1154] sm:$0xff]
    %v1156 = vld [vmem:[%s1154 + $0x8] sm:$0xff]
    %v1157 = vld [vmem:[%s1154 + $0x10] sm:$0xff]
    %v1158 = vld [vmem:[%s1154 + $0x18] sm:$0xff]
    %v1160 = vsel %vm72, %v1150, 0
    %v1163 = vsel %vm72, %v1151, 0
    %v1166 = vsel %vm72, %v1152, 0
    %v1169 = vsel %vm72, %v1153, 0
    %1171 = vmatprep.subr.mxu0 0.0
    %1172 = vmatpush1.msra.mxu0 0.0
    %1173 = vmatprep.subr.mxu0 0.0
    %1174 = vmatpush1.msra.mxu0 0.0
    %1175 = vmatprep.subr.mxu0 0.0
    %1176 = vmatpush1.msra.mxu0 0.0
    %1177 = vmatprep.subr.mxu0 0.0
    %1178 = vmatpush1.msra.mxu0 0.0
    %1179 = vmatprep.subr.mxu0 0.0
    %1180 = vmatpush1.msra.mxu0 0.0
    %1181 = vmatprep.subr.mxu0 0.0
    %1182 = vmatpush1.msra.mxu0 0.0
    %1183 = vmatprep.subr.mxu0 0.0
    %1184 = vmatpush1.msra.mxu0 0.0
    %1185 = vmatprep.subr.mxu0 0.0
    %1186 = vmatpush1.msra.mxu0 0.0
    %1187 = vmatprep.subr.mxu0 0.0
    %1188 = vmatpush1.msra.mxu0 0.0
    %1189 = vmatprep.subr.mxu0 0.0
    %1190 = vmatpush1.msra.mxu0 0.0
    %1191 = vmatprep.subr.mxu0 0.0
    %1192 = vmatpush1.msra.mxu0 0.0
    %1193 = vmatprep.subr.mxu0 0.0
    %1194 = vmatpush1.msra.mxu0 0.0
    %1195 = vmatprep.subr.mxu0 0.0
    %1196 = vmatpush1.msra.mxu0 %v1158
    %1197 = vmatprep.subr.mxu0 0.0
    %1198 = vmatpush1.msra.mxu0 %v1157
    %1199 = vmatprep.subr.mxu0 0.0
    %1200 = vmatpush1.msra.mxu0 %v1156
    %1201 = vmatprep.subr.mxu0 0.0
    %1202 = vmatpush1.msra.mxu0 %v1155
    %1203 = vmatprep.subr.mxu0 0.0
    %1204 = vmatpush2.msra.mxu0 0.0
    %1205 = vmatprep.subr.mxu0 0.0
    %1206 = vmatpush2.msra.mxu0 0.0
    %1207 = vmatprep.subr.mxu0 0.0
    %1208 = vmatpush2.msra.mxu0 0.0
    %1209 = vmatprep.subr.mxu0 0.0
    %1210 = vmatpush2.msra.mxu0 0.0
    %1211 = vmatprep.subr.mxu0 0.0
    %1212 = vmatpush2.msra.mxu0 0.0
    %1213 = vmatprep.subr.mxu0 0.0
    %1214 = vmatpush2.msra.mxu0 0.0
    %1215 = vmatprep.subr.mxu0 0.0
    %1216 = vmatpush2.msra.mxu0 0.0
    %1217 = vmatprep.subr.mxu0 0.0
    %1218 = vmatpush2.msra.mxu0 0.0
    %1219 = vmatprep.subr.mxu0 0.0
    %1220 = vmatpush2.msra.mxu0 0.0
    %1221 = vmatprep.subr.mxu0 0.0
    %1222 = vmatpush2.msra.mxu0 0.0
    %1223 = vmatprep.subr.mxu0 0.0
    %1224 = vmatpush2.msra.mxu0 0.0
    %1225 = vmatprep.subr.mxu0 0.0
    %1226 = vmatpush2.msra.mxu0 0.0
    %1227 = vmatprep.subr.mxu0 0.0
    %1228 = vmatpush2.msra.mxu0 0.0
    %1229 = vmatprep.subr.mxu0 0.0
    %1230 = vmatpush2.msra.mxu0 0.0
    %1231 = vmatprep.subr.mxu0 0.0
    %1232 = vmatpush2.msra.mxu0 0.0
    %1233 = vmatprep.subr.mxu0 0.0
    %1234 = vmatpush2.msra.mxu0 0.0
    %1235 = vmatprep.mubr.f32.mxu0 0.0
    %1236 = vmatmul.mubr.f32.gmra.mxu0 %v1160
    %v1237 = vpop.f32.mrf.mxu0
    %v1238 = vadd.f32 0.0, %v1237
    %v1239 = vpop.f32.mrf.mxu0
    %1240 = vmatprep.mubr.f32.mxu0 0.0
    %1241 = vmatmul.mubr.f32.gmra.mxu0 %v1163
    %v1242 = vpop.f32.mrf.mxu0
    %v1243 = vadd.f32 0.0, %v1242
    %v1244 = vpop.f32.mrf.mxu0
    %1245 = vmatprep.mubr.f32.mxu0 0.0
    %1246 = vmatmul.mubr.f32.gmra.mxu0 %v1166
    %v1247 = vpop.f32.mrf.mxu0
    %v1248 = vadd.f32 0.0, %v1247
    %v1249 = vpop.f32.mrf.mxu0
    %1250 = vmatprep.mubr.f32.mxu0 0.0
    %1251 = vmatmul.mubr.f32.gmra.mxu0 %v1169
    %v1252 = vpop.f32.mrf.mxu0
    %v1253 = vadd.f32 0.0, %v1252
    %v1254 = vpop.f32.mrf.mxu0
    %1255 = vdwg.mxu0
    %v1257 = vsel %vm170, %v1143, 0
    %v1260 = vsel %vm170, %v1144, 0
    %v1263 = vsel %vm170, %v1145, 0
    %v1266 = vsel %vm170, %v1146, 0
    %v1269 = vsel %vm183, %v1149, 0
    %1271 = vmatprep.subr.mxu0 0.0
    %1272 = vmatpush1.msra.mxu0 0.0
    %1273 = vmatprep.subr.mxu0 0.0
    %1274 = vmatpush1.msra.mxu0 0.0
    %1275 = vmatprep.subr.mxu0 0.0
    %1276 = vmatpush1.msra.mxu0 0.0
    %1277 = vmatprep.subr.mxu0 0.0
    %1278 = vmatpush1.msra.mxu0 0.0
    %1279 = vmatprep.subr.mxu0 0.0
    %1280 = vmatpush1.msra.mxu0 0.0
    %1281 = vmatprep.subr.mxu0 0.0
    %1282 = vmatpush1.msra.mxu0 0.0
    %1283 = vmatprep.subr.mxu0 0.0
    %1284 = vmatpush1.msra.mxu0 0.0
    %1285 = vmatprep.subr.mxu0 0.0
    %1286 = vmatpush1.msra.mxu0 0.0
    %1287 = vmatprep.subr.mxu0 0.0
    %1288 = vmatpush1.msra.mxu0 0.0
    %1289 = vmatprep.subr.mxu0 0.0
    %1290 = vmatpush1.msra.mxu0 0.0
    %1291 = vmatprep.subr.mxu0 0.0
    %1292 = vmatpush1.msra.mxu0 0.0
    %1293 = vmatprep.subr.mxu0 0.0
    %1294 = vmatpush1.msra.mxu0 0.0
    %1295 = vmatprep.subr.mxu0 0.0
    %1296 = vmatpush1.msra.mxu0 0.0
    %1297 = vmatprep.subr.mxu0 0.0
    %1298 = vmatpush1.msra.mxu0 0.0
    %1299 = vmatprep.subr.mxu0 0.0
    %1300 = vmatpush1.msra.mxu0 %v1269
    %1301 = vmatprep.subr.mxu0 0.0
    %1302 = vmatpush1.msra.mxu0 %v1148
    %1303 = vmatprep.subr.mxu0 0.0
    %1304 = vmatpush2.msra.mxu0 0.0
    %1305 = vmatprep.subr.mxu0 0.0
    %1306 = vmatpush2.msra.mxu0 0.0
    %1307 = vmatprep.subr.mxu0 0.0
    %1308 = vmatpush2.msra.mxu0 0.0
    %1309 = vmatprep.subr.mxu0 0.0
    %1310 = vmatpush2.msra.mxu0 0.0
    %1311 = vmatprep.subr.mxu0 0.0
    %1312 = vmatpush2.msra.mxu0 0.0
    %1313 = vmatprep.subr.mxu0 0.0
    %1314 = vmatpush2.msra.mxu0 0.0
    %1315 = vmatprep.subr.mxu0 0.0
    %1316 = vmatpush2.msra.mxu0 0.0
    %1317 = vmatprep.subr.mxu0 0.0
    %1318 = vmatpush2.msra.mxu0 0.0
    %1319 = vmatprep.subr.mxu0 0.0
    %1320 = vmatpush2.msra.mxu0 0.0
    %1321 = vmatprep.subr.mxu0 0.0
    %1322 = vmatpush2.msra.mxu0 0.0
    %1323 = vmatprep.subr.mxu0 0.0
    %1324 = vmatpush2.msra.mxu0 0.0
    %1325 = vmatprep.subr.mxu0 0.0
    %1326 = vmatpush2.msra.mxu0 0.0
    %1327 = vmatprep.subr.mxu0 0.0
    %1328 = vmatpush2.msra.mxu0 0.0
    %1329 = vmatprep.subr.mxu0 0.0
    %1330 = vmatpush2.msra.mxu0 0.0
    %1331 = vmatprep.subr.mxu0 0.0
    %1332 = vmatpush2.msra.mxu0 0.0
    %1333 = vmatprep.subr.mxu0 0.0
    %1334 = vmatpush2.msra.mxu0 0.0
    %1335 = vmatprep.mubr.f32.mxu0 0.0
    %1336 = vmatmul.mubr.f32.gmra.mxu0 %v1257
    %v1337 = vpop.f32.mrf.mxu0
    %v1338 = vadd.f32 %v1238, %v1337
    %v1339 = vpop.f32.mrf.mxu0
    %1340 = vmatprep.mubr.f32.mxu0 0.0
    %1341 = vmatmul.mubr.f32.gmra.mxu0 %v1260
    %v1342 = vpop.f32.mrf.mxu0
    %v1343 = vadd.f32 %v1243, %v1342
    %v1344 = vpop.f32.mrf.mxu0
    %1345 = vmatprep.mubr.f32.mxu0 0.0
    %1346 = vmatmul.mubr.f32.gmra.mxu0 %v1263
    %v1347 = vpop.f32.mrf.mxu0
    %v1348 = vadd.f32 %v1248, %v1347
    %v1349 = vpop.f32.mrf.mxu0
    %1350 = vmatprep.mubr.f32.mxu0 0.0
    %1351 = vmatmul.mubr.f32.gmra.mxu0 %v1266
    %v1352 = vpop.f32.mrf.mxu0
    %v1353 = vadd.f32 %v1253, %v1352
    %v1354 = vpop.f32.mrf.mxu0
    %1355 = vdwg.mxu0
    %v1356 = vld [vmem:[%s6] sm:$0xff]
    %v1357 = vld [vmem:[%s6 + $0x8] sm:$0xff]
    %v1358 = vld [vmem:[%s6 + $0x10] sm:$0xff]
    %v1359 = vld [vmem:[%s6 + $0x18] sm:$0xff]
    %1361 = vset.pattern.permute.xlu0 0
    %1362 = vperm.xlu0 %1361, %v1356
    %v1363 = vpop.permute.xlu0 %1362
    %1366 = vset.pattern.permute.xlu0 0
    %1367 = vperm.xlu0 %1366, %v1357
    %v1368 = vpop.permute.xlu0 %1367
    %1371 = vset.pattern.permute.xlu0 0
    %1372 = vperm.xlu0 %1371, %v1358
    %v1373 = vpop.permute.xlu0 %1372
    %1376 = vset.pattern.permute.xlu0 0
    %1377 = vperm.xlu0 %1376, %v1359
    %v1378 = vpop.permute.xlu0 %1377
    %v1380 = vadd.f32 %v1338, %v1363
    %v1381 = vadd.f32 %v1343, %v1368
    %v1382 = vadd.f32 %v1348, %v1373
    %v1383 = vadd.f32 %v1353, %v1378
    %v1384 = vld [vmem:[%s7] sm:$0xff]
    %v1385 = vld [vmem:[%s7 + $0x8] sm:$0xff]
    %v1386 = vld [vmem:[%s7 + $0x10] sm:$0xff]
    %v1387 = vld [vmem:[%s7 + $0x18] sm:$0xff]
    %v1389 = vsel %vm72, %v1384, 0
    %v1392 = vsel %vm72, %v1385, 0
    %v1395 = vsel %vm72, %v1386, 0
    %v1398 = vsel %vm72, %v1387, 0
    %1400 = vmatprep.subr.mxu0 0.0
    %1401 = vmatpush1.msra.mxu0 0.0
    %1402 = vmatprep.subr.mxu0 0.0
    %1403 = vmatpush1.msra.mxu0 0.0
    %1404 = vmatprep.subr.mxu0 0.0
    %1405 = vmatpush1.msra.mxu0 0.0
    %1406 = vmatprep.subr.mxu0 0.0
    %1407 = vmatpush1.msra.mxu0 0.0
    %1408 = vmatprep.subr.mxu0 0.0
    %1409 = vmatpush1.msra.mxu0 0.0
    %1410 = vmatprep.subr.mxu0 0.0
    %1411 = vmatpush1.msra.mxu0 0.0
    %1412 = vmatprep.subr.mxu0 0.0
    %1413 = vmatpush1.msra.mxu0 0.0
    %1414 = vmatprep.subr.mxu0 0.0
    %1415 = vmatpush1.msra.mxu0 0.0
    %1416 = vmatprep.subr.mxu0 0.0
    %1417 = vmatpush1.msra.mxu0 0.0
    %1418 = vmatprep.subr.mxu0 0.0
    %1419 = vmatpush1.msra.mxu0 0.0
    %1420 = vmatprep.subr.mxu0 0.0
    %1421 = vmatpush1.msra.mxu0 0.0
    %1422 = vmatprep.subr.mxu0 0.0
    %1423 = vmatpush1.msra.mxu0 0.0
    %1424 = vmatprep.subr.mxu0 0.0
    %1425 = vmatpush1.msra.mxu0 %v1383
    %1426 = vmatprep.subr.mxu0 0.0
    %1427 = vmatpush1.msra.mxu0 %v1382
    %1428 = vmatprep.subr.mxu0 0.0
    %1429 = vmatpush1.msra.mxu0 %v1381
    %1430 = vmatprep.subr.mxu0 0.0
    %1431 = vmatpush1.msra.mxu0 %v1380
    %1432 = vmatprep.subr.mxu0 0.0
    %1433 = vmatpush2.msra.mxu0 0.0
    %1434 = vmatprep.subr.mxu0 0.0
    %1435 = vmatpush2.msra.mxu0 0.0
    %1436 = vmatprep.subr.mxu0 0.0
    %1437 = vmatpush2.msra.mxu0 0.0
    %1438 = vmatprep.subr.mxu0 0.0
    %1439 = vmatpush2.msra.mxu0 0.0
    %1440 = vmatprep.subr.mxu0 0.0
    %1441 = vmatpush2.msra.mxu0 0.0
    %1442 = vmatprep.subr.mxu0 0.0
    %1443 = vmatpush2.msra.mxu0 0.0
    %1444 = vmatprep.subr.mxu0 0.0
    %1445 = vmatpush2.msra.mxu0 0.0
    %1446 = vmatprep.subr.mxu0 0.0
    %1447 = vmatpush2.msra.mxu0 0.0
    %1448 = vmatprep.subr.mxu0 0.0
    %1449 = vmatpush2.msra.mxu0 0.0
    %1450 = vmatprep.subr.mxu0 0.0
    %1451 = vmatpush2.msra.mxu0 0.0
    %1452 = vmatprep.subr.mxu0 0.0
    %1453 = vmatpush2.msra.mxu0 0.0
    %1454 = vmatprep.subr.mxu0 0.0
    %1455 = vmatpush2.msra.mxu0 0.0
    %1456 = vmatprep.subr.mxu0 0.0
    %1457 = vmatpush2.msra.mxu0 0.0
    %1458 = vmatprep.subr.mxu0 0.0
    %1459 = vmatpush2.msra.mxu0 0.0
    %1460 = vmatprep.subr.mxu0 0.0
    %1461 = vmatpush2.msra.mxu0 0.0
    %1462 = vmatprep.subr.mxu0 0.0
    %1463 = vmatpush2.msra.mxu0 0.0
    %1464 = vmatprep.mubr.f32.mxu0 0.0
    %1465 = vmatmul.mubr.f32.gmra.mxu0 %v1389
    %v1466 = vpop.f32.mrf.mxu0
    %v1467 = vadd.f32 0.0, %v1466
    %v1468 = vpop.f32.mrf.mxu0
    %1469 = vmatprep.mubr.f32.mxu0 0.0
    %1470 = vmatmul.mubr.f32.gmra.mxu0 %v1392
    %v1471 = vpop.f32.mrf.mxu0
    %v1472 = vadd.f32 0.0, %v1471
    %v1473 = vpop.f32.mrf.mxu0
    %1474 = vmatprep.mubr.f32.mxu0 0.0
    %1475 = vmatmul.mubr.f32.gmra.mxu0 %v1395
    %v1476 = vpop.f32.mrf.mxu0
    %v1477 = vadd.f32 0.0, %v1476
    %v1478 = vpop.f32.mrf.mxu0
    %1479 = vmatprep.mubr.f32.mxu0 0.0
    %1480 = vmatmul.mubr.f32.gmra.mxu0 %v1398
    %v1481 = vpop.f32.mrf.mxu0
    %v1482 = vadd.f32 0.0, %v1481
    %v1483 = vpop.f32.mrf.mxu0
    %1484 = vdwg.mxu0
    %v1485 = vld [vmem:[%s3] sm:$0xff]
    %v1486 = vld [vmem:[%s3 + $0x8] sm:$0xff]
    %v1487 = vld [vmem:[%s403] sm:$0xff]
    %v1488 = vld [vmem:[%s403 + $0x8] sm:$0xff]
    %v1489 = vld [vmem:[%s403 + $0x10] sm:$0xff]
    %v1490 = vld [vmem:[%s403 + $0x18] sm:$0xff]
    %v1492 = vsel %vm72, %v1487, 0
    %v1495 = vsel %vm72, %v1488, 0
    %v1498 = vsel %vm72, %v1489, 0
    %v1501 = vsel %vm72, %v1490, 0
    %1503 = vmatprep.subr.mxu0 0.0
    %1504 = vmatpush1.msra.mxu0 0.0
    %1505 = vmatprep.subr.mxu0 0.0
    %1506 = vmatpush1.msra.mxu0 0.0
    %1507 = vmatprep.subr.mxu0 0.0
    %1508 = vmatpush1.msra.mxu0 0.0
    %1509 = vmatprep.subr.mxu0 0.0
    %1510 = vmatpush1.msra.mxu0 0.0
    %1511 = vmatprep.subr.mxu0 0.0
    %1512 = vmatpush1.msra.mxu0 0.0
    %1513 = vmatprep.subr.mxu0 0.0
    %1514 = vmatpush1.msra.mxu0 0.0
    %1515 = vmatprep.subr.mxu0 0.0
    %1516 = vmatpush1.msra.mxu0 0.0
    %1517 = vmatprep.subr.mxu0 0.0
    %1518 = vmatpush1.msra.mxu0 0.0
    %1519 = vmatprep.subr.mxu0 0.0
    %1520 = vmatpush1.msra.mxu0 0.0
    %1521 = vmatprep.subr.mxu0 0.0
    %1522 = vmatpush1.msra.mxu0 0.0
    %1523 = vmatprep.subr.mxu0 0.0
    %1524 = vmatpush1.msra.mxu0 0.0
    %1525 = vmatprep.subr.mxu0 0.0
    %1526 = vmatpush1.msra.mxu0 0.0
    %1527 = vmatprep.subr.mxu0 0.0
    %1528 = vmatpush1.msra.mxu0 %v1383
    %1529 = vmatprep.subr.mxu0 0.0
    %1530 = vmatpush1.msra.mxu0 %v1382
    %1531 = vmatprep.subr.mxu0 0.0
    %1532 = vmatpush1.msra.mxu0 %v1381
    %1533 = vmatprep.subr.mxu0 0.0
    %1534 = vmatpush1.msra.mxu0 %v1380
    %1535 = vmatprep.subr.mxu0 0.0
    %1536 = vmatpush2.msra.mxu0 0.0
    %1537 = vmatprep.subr.mxu0 0.0
    %1538 = vmatpush2.msra.mxu0 0.0
    %1539 = vmatprep.subr.mxu0 0.0
    %1540 = vmatpush2.msra.mxu0 0.0
    %1541 = vmatprep.subr.mxu0 0.0
    %1542 = vmatpush2.msra.mxu0 0.0
    %1543 = vmatprep.subr.mxu0 0.0
    %1544 = vmatpush2.msra.mxu0 0.0
    %1545 = vmatprep.subr.mxu0 0.0
    %1546 = vmatpush2.msra.mxu0 0.0
    %1547 = vmatprep.subr.mxu0 0.0
    %1548 = vmatpush2.msra.mxu0 0.0
    %1549 = vmatprep.subr.mxu0 0.0
    %1550 = vmatpush2.msra.mxu0 0.0
    %1551 = vmatprep.subr.mxu0 0.0
    %1552 = vmatpush2.msra.mxu0 0.0
    %1553 = vmatprep.subr.mxu0 0.0
    %1554 = vmatpush2.msra.mxu0 0.0
    %1555 = vmatprep.subr.mxu0 0.0
    %1556 = vmatpush2.msra.mxu0 0.0
    %1557 = vmatprep.subr.mxu0 0.0
    %1558 = vmatpush2.msra.mxu0 0.0
    %1559 = vmatprep.subr.mxu0 0.0
    %1560 = vmatpush2.msra.mxu0 0.0
    %1561 = vmatprep.subr.mxu0 0.0
    %1562 = vmatpush2.msra.mxu0 0.0
    %1563 = vmatprep.subr.mxu0 0.0
    %1564 = vmatpush2.msra.mxu0 0.0
    %1565 = vmatprep.subr.mxu0 0.0
    %1566 = vmatpush2.msra.mxu0 0.0
    %1567 = vmatprep.mubr.f32.mxu0 0.0
    %1568 = vmatmul.mubr.f32.gmra.mxu0 %v1492
    %v1569 = vpop.f32.mrf.mxu0
    %v1570 = vadd.f32 0.0, %v1569
    %v1571 = vpop.f32.mrf.mxu0
    %1572 = vmatprep.mubr.f32.mxu0 0.0
    %1573 = vmatmul.mubr.f32.gmra.mxu0 %v1495
    %v1574 = vpop.f32.mrf.mxu0
    %v1575 = vadd.f32 0.0, %v1574
    %v1576 = vpop.f32.mrf.mxu0
    %1577 = vmatprep.mubr.f32.mxu0 0.0
    %1578 = vmatmul.mubr.f32.gmra.mxu0 %v1498
    %v1579 = vpop.f32.mrf.mxu0
    %v1580 = vadd.f32 0.0, %v1579
    %v1581 = vpop.f32.mrf.mxu0
    %1582 = vmatprep.mubr.f32.mxu0 0.0
    %1583 = vmatmul.mubr.f32.gmra.mxu0 %v1501
    %v1584 = vpop.f32.mrf.mxu0
    %v1585 = vadd.f32 0.0, %v1584
    %v1586 = vpop.f32.mrf.mxu0
    %1587 = vdwg.mxu0
    %v1588 = vld [vmem:[%s505] sm:$0xff]
    %v1589 = vld [vmem:[%s505 + $0x8] sm:$0xff]
    %v1591 = vsel %vm508, %v1570, 0
    %v1594 = vsel %vm508, %v1575, 0
    %v1597 = vsel %vm508, %v1580, 0
    %v1600 = vsel %vm508, %v1585, 0
    %1602 = vmatprep.subr.mxu0 0.0
    %1603 = vmatpush1.msra.mxu0 0.0
    %1604 = vmatprep.subr.mxu0 0.0
    %1605 = vmatpush1.msra.mxu0 0.0
    %1606 = vmatprep.subr.mxu0 0.0
    %1607 = vmatpush1.msra.mxu0 0.0
    %1608 = vmatprep.subr.mxu0 0.0
    %1609 = vmatpush1.msra.mxu0 0.0
    %1610 = vmatprep.subr.mxu0 0.0
    %1611 = vmatpush1.msra.mxu0 0.0
    %1612 = vmatprep.subr.mxu0 0.0
    %1613 = vmatpush1.msra.mxu0 0.0
    %1614 = vmatprep.subr.mxu0 0.0
    %1615 = vmatpush1.msra.mxu0 0.0
    %1616 = vmatprep.subr.mxu0 0.0
    %1617 = vmatpush1.msra.mxu0 0.0
    %1618 = vmatprep.subr.mxu0 0.0
    %1619 = vmatpush1.msra.mxu0 0.0
    %1620 = vmatprep.subr.mxu0 0.0
    %1621 = vmatpush1.msra.mxu0 0.0
    %1622 = vmatprep.subr.mxu0 0.0
    %1623 = vmatpush1.msra.mxu0 0.0
    %1624 = vmatprep.subr.mxu0 0.0
    %1625 = vmatpush1.msra.mxu0 0.0
    %1626 = vmatprep.subr.mxu0 0.0
    %1627 = vmatpush1.msra.mxu0 0.0
    %1628 = vmatprep.subr.mxu0 0.0
    %1629 = vmatpush1.msra.mxu0 0.0
    %1630 = vmatprep.subr.mxu0 0.0
    %1631 = vmatpush1.msra.mxu0 %v1589
    %1632 = vmatprep.subr.mxu0 0.0
    %1633 = vmatpush1.msra.mxu0 %v1588
    %1634 = vmatprep.subr.mxu0 0.0
    %1635 = vmatpush2.msra.mxu0 0.0
    %1636 = vmatprep.subr.mxu0 0.0
    %1637 = vmatpush2.msra.mxu0 0.0
    %1638 = vmatprep.subr.mxu0 0.0
    %1639 = vmatpush2.msra.mxu0 0.0
    %1640 = vmatprep.subr.mxu0 0.0
    %1641 = vmatpush2.msra.mxu0 0.0
    %1642 = vmatprep.subr.mxu0 0.0
    %1643 = vmatpush2.msra.mxu0 0.0
    %1644 = vmatprep.subr.mxu0 0.0
    %1645 = vmatpush2.msra.mxu0 0.0
    %1646 = vmatprep.subr.mxu0 0.0
    %1647 = vmatpush2.msra.mxu0 0.0
    %1648 = vmatprep.subr.mxu0 0.0
    %1649 = vmatpush2.msra.mxu0 0.0
    %1650 = vmatprep.subr.mxu0 0.0
    %1651 = vmatpush2.msra.mxu0 0.0
    %1652 = vmatprep.subr.mxu0 0.0
    %1653 = vmatpush2.msra.mxu0 0.0
    %1654 = vmatprep.subr.mxu0 0.0
    %1655 = vmatpush2.msra.mxu0 0.0
    %1656 = vmatprep.subr.mxu0 0.0
    %1657 = vmatpush2.msra.mxu0 0.0
    %1658 = vmatprep.subr.mxu0 0.0
    %1659 = vmatpush2.msra.mxu0 0.0
    %1660 = vmatprep.subr.mxu0 0.0
    %1661 = vmatpush2.msra.mxu0 0.0
    %1662 = vmatprep.subr.mxu0 0.0
    %1663 = vmatpush2.msra.mxu0 0.0
    %1664 = vmatprep.subr.mxu0 0.0
    %1665 = vmatpush2.msra.mxu0 0.0
    %1666 = vmatprep.mubr.f32.mxu0 0.0
    %1667 = vmatmul.mubr.f32.gmra.mxu0 %v1591
    %v1668 = vpop.f32.mrf.mxu0
    %v1669 = vadd.f32 0.0, %v1668
    %v1670 = vpop.f32.mrf.mxu0
    %1671 = vmatprep.mubr.f32.mxu0 0.0
    %1672 = vmatmul.mubr.f32.gmra.mxu0 %v1594
    %v1673 = vpop.f32.mrf.mxu0
    %v1674 = vadd.f32 0.0, %v1673
    %v1675 = vpop.f32.mrf.mxu0
    %1676 = vmatprep.mubr.f32.mxu0 0.0
    %1677 = vmatmul.mubr.f32.gmra.mxu0 %v1597
    %v1678 = vpop.f32.mrf.mxu0
    %v1679 = vadd.f32 0.0, %v1678
    %v1680 = vpop.f32.mrf.mxu0
    %1681 = vmatprep.mubr.f32.mxu0 0.0
    %1682 = vmatmul.mubr.f32.gmra.mxu0 %v1600
    %v1683 = vpop.f32.mrf.mxu0
    %v1684 = vadd.f32 0.0, %v1683
    %v1685 = vpop.f32.mrf.mxu0
    %1686 = vdwg.mxu0
    %v1688 = vsel %vm508, %v1467, 0
    %v1691 = vsel %vm508, %v1472, 0
    %v1694 = vsel %vm508, %v1477, 0
    %v1697 = vsel %vm508, %v1482, 0
    %1699 = vmatprep.subr.mxu0 0.0
    %1700 = vmatpush1.msra.mxu0 0.0
    %1701 = vmatprep.subr.mxu0 0.0
    %1702 = vmatpush1.msra.mxu0 0.0
    %1703 = vmatprep.subr.mxu0 0.0
    %1704 = vmatpush1.msra.mxu0 0.0
    %1705 = vmatprep.subr.mxu0 0.0
    %1706 = vmatpush1.msra.mxu0 0.0
    %1707 = vmatprep.subr.mxu0 0.0
    %1708 = vmatpush1.msra.mxu0 0.0
    %1709 = vmatprep.subr.mxu0 0.0
    %1710 = vmatpush1.msra.mxu0 0.0
    %1711 = vmatprep.subr.mxu0 0.0
    %1712 = vmatpush1.msra.mxu0 0.0
    %1713 = vmatprep.subr.mxu0 0.0
    %1714 = vmatpush1.msra.mxu0 0.0
    %1715 = vmatprep.subr.mxu0 0.0
    %1716 = vmatpush1.msra.mxu0 0.0
    %1717 = vmatprep.subr.mxu0 0.0
    %1718 = vmatpush1.msra.mxu0 0.0
    %1719 = vmatprep.subr.mxu0 0.0
    %1720 = vmatpush1.msra.mxu0 0.0
    %1721 = vmatprep.subr.mxu0 0.0
    %1722 = vmatpush1.msra.mxu0 0.0
    %1723 = vmatprep.subr.mxu0 0.0
    %1724 = vmatpush1.msra.mxu0 0.0
    %1725 = vmatprep.subr.mxu0 0.0
    %1726 = vmatpush1.msra.mxu0 0.0
    %1727 = vmatprep.subr.mxu0 0.0
    %1728 = vmatpush1.msra.mxu0 %v1486
    %1729 = vmatprep.subr.mxu0 0.0
    %1730 = vmatpush1.msra.mxu0 %v1485
    %1731 = vmatprep.subr.mxu0 0.0
    %1732 = vmatpush2.msra.mxu0 0.0
    %1733 = vmatprep.subr.mxu0 0.0
    %1734 = vmatpush2.msra.mxu0 0.0
    %1735 = vmatprep.subr.mxu0 0.0
    %1736 = vmatpush2.msra.mxu0 0.0
    %1737 = vmatprep.subr.mxu0 0.0
    %1738 = vmatpush2.msra.mxu0 0.0
    %1739 = vmatprep.subr.mxu0 0.0
    %1740 = vmatpush2.msra.mxu0 0.0
    %1741 = vmatprep.subr.mxu0 0.0
    %1742 = vmatpush2.msra.mxu0 0.0
    %1743 = vmatprep.subr.mxu0 0.0
    %1744 = vmatpush2.msra.mxu0 0.0
    %1745 = vmatprep.subr.mxu0 0.0
    %1746 = vmatpush2.msra.mxu0 0.0
    %1747 = vmatprep.subr.mxu0 0.0
    %1748 = vmatpush2.msra.mxu0 0.0
    %1749 = vmatprep.subr.mxu0 0.0
    %1750 = vmatpush2.msra.mxu0 0.0
    %1751 = vmatprep.subr.mxu0 0.0
    %1752 = vmatpush2.msra.mxu0 0.0
    %1753 = vmatprep.subr.mxu0 0.0
    %1754 = vmatpush2.msra.mxu0 0.0
    %1755 = vmatprep.subr.mxu0 0.0
    %1756 = vmatpush2.msra.mxu0 0.0
    %1757 = vmatprep.subr.mxu0 0.0
    %1758 = vmatpush2.msra.mxu0 0.0
    %1759 = vmatprep.subr.mxu0 0.0
    %1760 = vmatpush2.msra.mxu0 0.0
    %1761 = vmatprep.subr.mxu0 0.0
    %1762 = vmatpush2.msra.mxu0 0.0
    %1763 = vmatprep.mubr.f32.mxu0 0.0
    %1764 = vmatmul.mubr.f32.gmra.mxu0 %v1688
    %v1765 = vpop.f32.mrf.mxu0
    %v1766 = vadd.f32 %v1669, %v1765
    %v1767 = vpop.f32.mrf.mxu0
    %1768 = vmatprep.mubr.f32.mxu0 0.0
    %1769 = vmatmul.mubr.f32.gmra.mxu0 %v1691
    %v1770 = vpop.f32.mrf.mxu0
    %v1771 = vadd.f32 %v1674, %v1770
    %v1772 = vpop.f32.mrf.mxu0
    %1773 = vmatprep.mubr.f32.mxu0 0.0
    %1774 = vmatmul.mubr.f32.gmra.mxu0 %v1694
    %v1775 = vpop.f32.mrf.mxu0
    %v1776 = vadd.f32 %v1679, %v1775
    %v1777 = vpop.f32.mrf.mxu0
    %1778 = vmatprep.mubr.f32.mxu0 0.0
    %1779 = vmatmul.mubr.f32.gmra.mxu0 %v1697
    %v1780 = vpop.f32.mrf.mxu0
    %v1781 = vadd.f32 %v1684, %v1780
    %v1782 = vpop.f32.mrf.mxu0
    %1783 = vdwg.mxu0
    %v1784 = vld [vmem:[%s8] sm:$0xff]
    %v1785 = vld [vmem:[%s8 + $0x8] sm:$0xff]
    %v1786 = vld [vmem:[%s8 + $0x10] sm:$0xff]
    %v1787 = vld [vmem:[%s8 + $0x18] sm:$0xff]
    %1789 = vset.pattern.permute.xlu0 0
    %1790 = vperm.xlu0 %1789, %v1784
    %v1791 = vpop.permute.xlu0 %1790
    %1794 = vset.pattern.permute.xlu0 0
    %1795 = vperm.xlu0 %1794, %v1785
    %v1796 = vpop.permute.xlu0 %1795
    %1799 = vset.pattern.permute.xlu0 0
    %1800 = vperm.xlu0 %1799, %v1786
    %v1801 = vpop.permute.xlu0 %1800
    %1804 = vset.pattern.permute.xlu0 0
    %1805 = vperm.xlu0 %1804, %v1787
    %v1806 = vpop.permute.xlu0 %1805
    %v1808 = vadd.f32 %v1766, %v1791
    %v1809 = vadd.f32 %v1771, %v1796
    %v1810 = vadd.f32 %v1776, %v1801
    %v1811 = vadd.f32 %v1781, %v1806
    %s1812 = scalar_lea.vmem %s2, 32
    %v1813 = vld [vmem:[%s1812] sm:$0xff]
    %v1814 = vld [vmem:[%s1812 + $0x8] sm:$0xff]
    %v1815 = vld [vmem:[%s1812 + $0x10] sm:$0xff]
    %v1816 = vld [vmem:[%s1812 + $0x18] sm:$0xff]
    %v1817 = vld [vmem:[%s9] sm:$0xff]
    %v1818 = vld [vmem:[%s9 + $0x8] sm:$0xff]
    %v1819 = vld [vmem:[%s9 + $0x10] sm:$0xff]
    %v1820 = vld [vmem:[%s9 + $0x18] sm:$0xff]
    %v1821 = vld [vmem:[%s10] sm:$0xff]
    %v1822 = vld [vmem:[%s10 + $0x8] sm:$0xff]
    %v1823 = vld [vmem:[%s10 + $0x10] sm:$0xff]
    %v1824 = vld [vmem:[%s10 + $0x18] sm:$0xff]
    %v1826 = vsel %vm72, %v1821, 0
    %v1829 = vsel %vm72, %v1822, 0
    %v1832 = vsel %vm72, %v1823, 0
    %v1835 = vsel %vm72, %v1824, 0
    %1837 = vmatprep.subr.mxu0 0.0
    %1838 = vmatpush1.msra.mxu0 0.0
    %1839 = vmatprep.subr.mxu0 0.0
    %1840 = vmatpush1.msra.mxu0 0.0
    %1841 = vmatprep.subr.mxu0 0.0
    %1842 = vmatpush1.msra.mxu0 0.0
    %1843 = vmatprep.subr.mxu0 0.0
    %1844 = vmatpush1.msra.mxu0 0.0
    %1845 = vmatprep.subr.mxu0 0.0
    %1846 = vmatpush1.msra.mxu0 0.0
    %1847 = vmatprep.subr.mxu0 0.0
    %1848 = vmatpush1.msra.mxu0 0.0
    %1849 = vmatprep.subr.mxu0 0.0
    %1850 = vmatpush1.msra.mxu0 0.0
    %1851 = vmatprep.subr.mxu0 0.0
    %1852 = vmatpush1.msra.mxu0 0.0
    %1853 = vmatprep.subr.mxu0 0.0
    %1854 = vmatpush1.msra.mxu0 0.0
    %1855 = vmatprep.subr.mxu0 0.0
    %1856 = vmatpush1.msra.mxu0 0.0
    %1857 = vmatprep.subr.mxu0 0.0
    %1858 = vmatpush1.msra.mxu0 0.0
    %1859 = vmatprep.subr.mxu0 0.0
    %1860 = vmatpush1.msra.mxu0 0.0
    %1861 = vmatprep.subr.mxu0 0.0
    %1862 = vmatpush1.msra.mxu0 %v1816
    %1863 = vmatprep.subr.mxu0 0.0
    %1864 = vmatpush1.msra.mxu0 %v1815
    %1865 = vmatprep.subr.mxu0 0.0
    %1866 = vmatpush1.msra.mxu0 %v1814
    %1867 = vmatprep.subr.mxu0 0.0
    %1868 = vmatpush1.msra.mxu0 %v1813
    %1869 = vmatprep.subr.mxu0 0.0
    %1870 = vmatpush2.msra.mxu0 0.0
    %1871 = vmatprep.subr.mxu0 0.0
    %1872 = vmatpush2.msra.mxu0 0.0
    %1873 = vmatprep.subr.mxu0 0.0
    %1874 = vmatpush2.msra.mxu0 0.0
    %1875 = vmatprep.subr.mxu0 0.0
    %1876 = vmatpush2.msra.mxu0 0.0
    %1877 = vmatprep.subr.mxu0 0.0
    %1878 = vmatpush2.msra.mxu0 0.0
    %1879 = vmatprep.subr.mxu0 0.0
    %1880 = vmatpush2.msra.mxu0 0.0
    %1881 = vmatprep.subr.mxu0 0.0
    %1882 = vmatpush2.msra.mxu0 0.0
    %1883 = vmatprep.subr.mxu0 0.0
    %1884 = vmatpush2.msra.mxu0 0.0
    %1885 = vmatprep.subr.mxu0 0.0
    %1886 = vmatpush2.msra.mxu0 0.0
    %1887 = vmatprep.subr.mxu0 0.0
    %1888 = vmatpush2.msra.mxu0 0.0
    %1889 = vmatprep.subr.mxu0 0.0
    %1890 = vmatpush2.msra.mxu0 0.0
    %1891 = vmatprep.subr.mxu0 0.0
    %1892 = vmatpush2.msra.mxu0 0.0
    %1893 = vmatprep.subr.mxu0 0.0
    %1894 = vmatpush2.msra.mxu0 0.0
    %1895 = vmatprep.subr.mxu0 0.0
    %1896 = vmatpush2.msra.mxu0 0.0
    %1897 = vmatprep.subr.mxu0 0.0
    %1898 = vmatpush2.msra.mxu0 0.0
    %1899 = vmatprep.subr.mxu0 0.0
    %1900 = vmatpush2.msra.mxu0 0.0
    %1901 = vmatprep.mubr.f32.mxu0 0.0
    %1902 = vmatmul.mubr.f32.gmra.mxu0 %v1826
    %v1903 = vpop.f32.mrf.mxu0
    %v1904 = vadd.f32 0.0, %v1903
    %v1905 = vpop.f32.mrf.mxu0
    %1906 = vmatprep.mubr.f32.mxu0 0.0
    %1907 = vmatmul.mubr.f32.gmra.mxu0 %v1829
    %v1908 = vpop.f32.mrf.mxu0
    %v1909 = vadd.f32 0.0, %v1908
    %v1910 = vpop.f32.mrf.mxu0
    %1911 = vmatprep.mubr.f32.mxu0 0.0
    %1912 = vmatmul.mubr.f32.gmra.mxu0 %v1832
    %v1913 = vpop.f32.mrf.mxu0
    %v1914 = vadd.f32 0.0, %v1913
    %v1915 = vpop.f32.mrf.mxu0
    %1916 = vmatprep.mubr.f32.mxu0 0.0
    %1917 = vmatmul.mubr.f32.gmra.mxu0 %v1835
    %v1918 = vpop.f32.mrf.mxu0
    %v1919 = vadd.f32 0.0, %v1918
    %v1920 = vpop.f32.mrf.mxu0
    %1921 = vdwg.mxu0
    %v1923 = vsel %vm72, %v1817, 0
    %v1926 = vsel %vm72, %v1818, 0
    %v1929 = vsel %vm72, %v1819, 0
    %v1932 = vsel %vm72, %v1820, 0
    %1934 = vmatprep.subr.mxu0 0.0
    %1935 = vmatpush1.msra.mxu0 0.0
    %1936 = vmatprep.subr.mxu0 0.0
    %1937 = vmatpush1.msra.mxu0 0.0
    %1938 = vmatprep.subr.mxu0 0.0
    %1939 = vmatpush1.msra.mxu0 0.0
    %1940 = vmatprep.subr.mxu0 0.0
    %1941 = vmatpush1.msra.mxu0 0.0
    %1942 = vmatprep.subr.mxu0 0.0
    %1943 = vmatpush1.msra.mxu0 0.0
    %1944 = vmatprep.subr.mxu0 0.0
    %1945 = vmatpush1.msra.mxu0 0.0
    %1946 = vmatprep.subr.mxu0 0.0
    %1947 = vmatpush1.msra.mxu0 0.0
    %1948 = vmatprep.subr.mxu0 0.0
    %1949 = vmatpush1.msra.mxu0 0.0
    %1950 = vmatprep.subr.mxu0 0.0
    %1951 = vmatpush1.msra.mxu0 0.0
    %1952 = vmatprep.subr.mxu0 0.0
    %1953 = vmatpush1.msra.mxu0 0.0
    %1954 = vmatprep.subr.mxu0 0.0
    %1955 = vmatpush1.msra.mxu0 0.0
    %1956 = vmatprep.subr.mxu0 0.0
    %1957 = vmatpush1.msra.mxu0 0.0
    %1958 = vmatprep.subr.mxu0 0.0
    %1959 = vmatpush1.msra.mxu0 %v1811
    %1960 = vmatprep.subr.mxu0 0.0
    %1961 = vmatpush1.msra.mxu0 %v1810
    %1962 = vmatprep.subr.mxu0 0.0
    %1963 = vmatpush1.msra.mxu0 %v1809
    %1964 = vmatprep.subr.mxu0 0.0
    %1965 = vmatpush1.msra.mxu0 %v1808
    %1966 = vmatprep.subr.mxu0 0.0
    %1967 = vmatpush2.msra.mxu0 0.0
    %1968 = vmatprep.subr.mxu0 0.0
    %1969 = vmatpush2.msra.mxu0 0.0
    %1970 = vmatprep.subr.mxu0 0.0
    %1971 = vmatpush2.msra.mxu0 0.0
    %1972 = vmatprep.subr.mxu0 0.0
    %1973 = vmatpush2.msra.mxu0 0.0
    %1974 = vmatprep.subr.mxu0 0.0
    %1975 = vmatpush2.msra.mxu0 0.0
    %1976 = vmatprep.subr.mxu0 0.0
    %1977 = vmatpush2.msra.mxu0 0.0
    %1978 = vmatprep.subr.mxu0 0.0
    %1979 = vmatpush2.msra.mxu0 0.0
    %1980 = vmatprep.subr.mxu0 0.0
    %1981 = vmatpush2.msra.mxu0 0.0
    %1982 = vmatprep.subr.mxu0 0.0
    %1983 = vmatpush2.msra.mxu0 0.0
    %1984 = vmatprep.subr.mxu0 0.0
    %1985 = vmatpush2.msra.mxu0 0.0
    %1986 = vmatprep.subr.mxu0 0.0
    %1987 = vmatpush2.msra.mxu0 0.0
    %1988 = vmatprep.subr.mxu0 0.0
    %1989 = vmatpush2.msra.mxu0 0.0
    %1990 = vmatprep.subr.mxu0 0.0
    %1991 = vmatpush2.msra.mxu0 0.0
    %1992 = vmatprep.subr.mxu0 0.0
    %1993 = vmatpush2.msra.mxu0 0.0
    %1994 = vmatprep.subr.mxu0 0.0
    %1995 = vmatpush2.msra.mxu0 0.0
    %1996 = vmatprep.subr.mxu0 0.0
    %1997 = vmatpush2.msra.mxu0 0.0
    %1998 = vmatprep.mubr.f32.mxu0 0.0
    %1999 = vmatmul.mubr.f32.gmra.mxu0 %v1923
    %v2000 = vpop.f32.mrf.mxu0
    %v2001 = vadd.f32 %v1904, %v2000
    %v2002 = vpop.f32.mrf.mxu0
    %2003 = vmatprep.mubr.f32.mxu0 0.0
    %2004 = vmatmul.mubr.f32.gmra.mxu0 %v1926
    %v2005 = vpop.f32.mrf.mxu0
    %v2006 = vadd.f32 %v1909, %v2005
    %v2007 = vpop.f32.mrf.mxu0
    %2008 = vmatprep.mubr.f32.mxu0 0.0
    %2009 = vmatmul.mubr.f32.gmra.mxu0 %v1929
    %v2010 = vpop.f32.mrf.mxu0
    %v2011 = vadd.f32 %v1914, %v2010
    %v2012 = vpop.f32.mrf.mxu0
    %2013 = vmatprep.mubr.f32.mxu0 0.0
    %2014 = vmatmul.mubr.f32.gmra.mxu0 %v1932
    %v2015 = vpop.f32.mrf.mxu0
    %v2016 = vadd.f32 %v1919, %v2015
    %v2017 = vpop.f32.mrf.mxu0
    %2018 = vdwg.mxu0
    %v2019 = vld [vmem:[%s11] sm:$0xff]
    %v2020 = vld [vmem:[%s11 + $0x8] sm:$0xff]
    %v2021 = vld [vmem:[%s11 + $0x10] sm:$0xff]
    %v2022 = vld [vmem:[%s11 + $0x18] sm:$0xff]
    %2024 = vset.pattern.permute.xlu0 0
    %2025 = vperm.xlu0 %2024, %v2019
    %v2026 = vpop.permute.xlu0 %2025
    %2029 = vset.pattern.permute.xlu0 0
    %2030 = vperm.xlu0 %2029, %v2020
    %v2031 = vpop.permute.xlu0 %2030
    %2034 = vset.pattern.permute.xlu0 0
    %2035 = vperm.xlu0 %2034, %v2021
    %v2036 = vpop.permute.xlu0 %2035
    %2039 = vset.pattern.permute.xlu0 0
    %2040 = vperm.xlu0 %2039, %v2022
    %v2041 = vpop.permute.xlu0 %2040
    %v2043 = vadd.f32 %v2001, %v2026
    %v2044 = vadd.f32 %v2006, %v2031
    %v2045 = vadd.f32 %v2011, %v2036
    %v2046 = vadd.f32 %v2016, %v2041
    %vm2047 = vcmp.gt.f32.partialorder %v2043, 0.0
    %vm2048 = vcmp.gt.f32.partialorder %v2044, 0.0
    %vm2049 = vcmp.gt.f32.partialorder %v2045, 0.0
    %vm2050 = vcmp.gt.f32.partialorder %v2046, 0.0
    %v2051 = vmul.f32 %v969, %v2043
    %v2052 = vmul.f32 %v969, %v2044
    %v2053 = vmul.f32 %v969, %v2045
    %v2054 = vmul.f32 %v969, %v2046
    %v2055 = vsel %vm2047, %v2043, %v2051
    %v2056 = vsel %vm2048, %v2044, %v2052
    %v2057 = vsel %vm2049, %v2045, %v2053
    %v2058 = vsel %vm2050, %v2046, %v2054
    %s2059 = scalar_lea.vmem %s17, 64
    %2060 = vst.msk [vmem:[%s2059] sm:$0xff] %vm508, %v2055
    %2061 = vst.msk [vmem:[%s2059 + $0x8] sm:$0xff] %vm508, %v2056
    %2062 = vst.msk [vmem:[%s2059 + $0x10] sm:$0xff] %vm508, %v2057
    %2063 = vst.msk [vmem:[%s2059 + $0x18] sm:$0xff] %vm508, %v2058
    %2064 = vst.msk [vmem:[%s2059 + $0x20] sm:$0xff] %vm508, %v1813
    %2065 = vst.msk [vmem:[%s2059 + $0x28] sm:$0xff] %vm508, %v1814
    %2066 = vst.msk [vmem:[%s2059 + $0x30] sm:$0xff] %vm508, %v1815
    %2067 = vst.msk [vmem:[%s2059 + $0x38] sm:$0xff] %vm508, %v1816
    %v2068 = vld [vmem:[%s12] sm:$0xf]
    %v2069 = vld [vmem:[%s13] sm:$0xf]
    %v2071 = vsel %vm72, %v2069, 0
    %2073 = vmatprep.subr.mxu0 0.0
    %2074 = vmatpush1.msra.mxu0 0.0
    %2075 = vmatprep.subr.mxu0 0.0
    %2076 = vmatpush1.msra.mxu0 0.0
    %2077 = vmatprep.subr.mxu0 0.0
    %2078 = vmatpush1.msra.mxu0 0.0
    %2079 = vmatprep.subr.mxu0 0.0
    %2080 = vmatpush1.msra.mxu0 0.0
    %2081 = vmatprep.subr.mxu0 0.0
    %2082 = vmatpush1.msra.mxu0 0.0
    %2083 = vmatprep.subr.mxu0 0.0
    %2084 = vmatpush1.msra.mxu0 0.0
    %2085 = vmatprep.subr.mxu0 0.0
    %2086 = vmatpush1.msra.mxu0 0.0
    %2087 = vmatprep.subr.mxu0 0.0
    %2088 = vmatpush1.msra.mxu0 0.0
    %2089 = vmatprep.subr.mxu0 0.0
    %2090 = vmatpush1.msra.mxu0 0.0
    %2091 = vmatprep.subr.mxu0 0.0
    %2092 = vmatpush1.msra.mxu0 0.0
    %2093 = vmatprep.subr.mxu0 0.0
    %2094 = vmatpush1.msra.mxu0 0.0
    %2095 = vmatprep.subr.mxu0 0.0
    %2096 = vmatpush1.msra.mxu0 0.0
    %2097 = vmatprep.subr.mxu0 0.0
    %2098 = vmatpush1.msra.mxu0 %v1816
    %2099 = vmatprep.subr.mxu0 0.0
    %2100 = vmatpush1.msra.mxu0 %v1815
    %2101 = vmatprep.subr.mxu0 0.0
    %2102 = vmatpush1.msra.mxu0 %v1814
    %2103 = vmatprep.subr.mxu0 0.0
    %2104 = vmatpush1.msra.mxu0 %v1813
    %2105 = vmatprep.subr.mxu0 0.0
    %2106 = vmatpush2.msra.mxu0 0.0
    %2107 = vmatprep.subr.mxu0 0.0
    %2108 = vmatpush2.msra.mxu0 0.0
    %2109 = vmatprep.subr.mxu0 0.0
    %2110 = vmatpush2.msra.mxu0 0.0
    %2111 = vmatprep.subr.mxu0 0.0
    %2112 = vmatpush2.msra.mxu0 0.0
    %2113 = vmatprep.subr.mxu0 0.0
    %2114 = vmatpush2.msra.mxu0 0.0
    %2115 = vmatprep.subr.mxu0 0.0
    %2116 = vmatpush2.msra.mxu0 0.0
    %2117 = vmatprep.subr.mxu0 0.0
    %2118 = vmatpush2.msra.mxu0 0.0
    %2119 = vmatprep.subr.mxu0 0.0
    %2120 = vmatpush2.msra.mxu0 0.0
    %2121 = vmatprep.subr.mxu0 0.0
    %2122 = vmatpush2.msra.mxu0 0.0
    %2123 = vmatprep.subr.mxu0 0.0
    %2124 = vmatpush2.msra.mxu0 0.0
    %2125 = vmatprep.subr.mxu0 0.0
    %2126 = vmatpush2.msra.mxu0 0.0
    %2127 = vmatprep.subr.mxu0 0.0
    %2128 = vmatpush2.msra.mxu0 0.0
    %2129 = vmatprep.subr.mxu0 0.0
    %2130 = vmatpush2.msra.mxu0 0.0
    %2131 = vmatprep.subr.mxu0 0.0
    %2132 = vmatpush2.msra.mxu0 0.0
    %2133 = vmatprep.subr.mxu0 0.0
    %2134 = vmatpush2.msra.mxu0 0.0
    %2135 = vmatprep.subr.mxu0 0.0
    %2136 = vmatpush2.msra.mxu0 0.0
    %2137 = vmatprep.mubr.f32.mxu0 0.0
    %2138 = vmatmul.mubr.f32.gmra.mxu0 %v2071
    %v2139 = vpop.f32.mrf.mxu0
    %v2140 = vadd.f32 0.0, %v2139
    %v2141 = vpop.f32.mrf.mxu0
    %2142 = vdwg.mxu0
    %v2144 = vsel %vm72, %v2068, 0
    %2146 = vmatprep.subr.mxu0 0.0
    %2147 = vmatpush1.msra.mxu0 0.0
    %2148 = vmatprep.subr.mxu0 0.0
    %2149 = vmatpush1.msra.mxu0 0.0
    %2150 = vmatprep.subr.mxu0 0.0
    %2151 = vmatpush1.msra.mxu0 0.0
    %2152 = vmatprep.subr.mxu0 0.0
    %2153 = vmatpush1.msra.mxu0 0.0
    %2154 = vmatprep.subr.mxu0 0.0
    %2155 = vmatpush1.msra.mxu0 0.0
    %2156 = vmatprep.subr.mxu0 0.0
    %2157 = vmatpush1.msra.mxu0 0.0
    %2158 = vmatprep.subr.mxu0 0.0
    %2159 = vmatpush1.msra.mxu0 0.0
    %2160 = vmatprep.subr.mxu0 0.0
    %2161 = vmatpush1.msra.mxu0 0.0
    %2162 = vmatprep.subr.mxu0 0.0
    %2163 = vmatpush1.msra.mxu0 0.0
    %2164 = vmatprep.subr.mxu0 0.0
    %2165 = vmatpush1.msra.mxu0 0.0
    %2166 = vmatprep.subr.mxu0 0.0
    %2167 = vmatpush1.msra.mxu0 0.0
    %2168 = vmatprep.subr.mxu0 0.0
    %2169 = vmatpush1.msra.mxu0 0.0
    %2170 = vmatprep.subr.mxu0 0.0
    %2171 = vmatpush1.msra.mxu0 %v2058
    %2172 = vmatprep.subr.mxu0 0.0
    %2173 = vmatpush1.msra.mxu0 %v2057
    %2174 = vmatprep.subr.mxu0 0.0
    %2175 = vmatpush1.msra.mxu0 %v2056
    %2176 = vmatprep.subr.mxu0 0.0
    %2177 = vmatpush1.msra.mxu0 %v2055
    %2178 = vmatprep.subr.mxu0 0.0
    %2179 = vmatpush2.msra.mxu0 0.0
    %2180 = vmatprep.subr.mxu0 0.0
    %2181 = vmatpush2.msra.mxu0 0.0
    %2182 = vmatprep.subr.mxu0 0.0
    %2183 = vmatpush2.msra.mxu0 0.0
    %2184 = vmatprep.subr.mxu0 0.0
    %2185 = vmatpush2.msra.mxu0 0.0
    %2186 = vmatprep.subr.mxu0 0.0
    %2187 = vmatpush2.msra.mxu0 0.0
    %2188 = vmatprep.subr.mxu0 0.0
    %2189 = vmatpush2.msra.mxu0 0.0
    %2190 = vmatprep.subr.mxu0 0.0
    %2191 = vmatpush2.msra.mxu0 0.0
    %2192 = vmatprep.subr.mxu0 0.0
    %2193 = vmatpush2.msra.mxu0 0.0
    %2194 = vmatprep.subr.mxu0 0.0
    %2195 = vmatpush2.msra.mxu0 0.0
    %2196 = vmatprep.subr.mxu0 0.0
    %2197 = vmatpush2.msra.mxu0 0.0
    %2198 = vmatprep.subr.mxu0 0.0
    %2199 = vmatpush2.msra.mxu0 0.0
    %2200 = vmatprep.subr.mxu0 0.0
    %2201 = vmatpush2.msra.mxu0 0.0
    %2202 = vmatprep.subr.mxu0 0.0
    %2203 = vmatpush2.msra.mxu0 0.0
    %2204 = vmatprep.subr.mxu0 0.0
    %2205 = vmatpush2.msra.mxu0 0.0
    %2206 = vmatprep.subr.mxu0 0.0
    %2207 = vmatpush2.msra.mxu0 0.0
    %2208 = vmatprep.subr.mxu0 0.0
    %2209 = vmatpush2.msra.mxu0 0.0
    %2210 = vmatprep.mubr.f32.mxu0 0.0
    %2211 = vmatmul.mubr.f32.gmra.mxu0 %v2144
    %v2212 = vpop.f32.mrf.mxu0
    %v2213 = vadd.f32 %v2140, %v2212
    %v2214 = vpop.f32.mrf.mxu0
    %2215 = vdwg.mxu0
    %v2216 = vld [vmem:[%s14] sm:$0xf]
    %2218 = vset.pattern.permute.xlu0 0
    %2219 = vperm.xlu0 %2218, %v2216
    %v2220 = vpop.permute.xlu0 %2219
    %v2222 = vadd.f32 %v2213, %v2220
    %s2223 = scalar_lea.vmem [#allocation3], 4
    %2224 = vst.msk [vmem:[%s2223] sm:$0xf] %vm1141, %v2222
    // Predicated region
    $region66: #{spatial_decoder_forward.1} parent=1 // pred_check
      _
    $region67: #{spatial_decoder_forward.1} parent=1 // pred_check_branch
      %2226 = sbr.rel (0) target = $region69
    $region68: #{spatial_decoder_forward.1} parent=1 // pred_region
      %s2228 = ssub.s32 128, 128
      %2229 = vsyncadd [#allocation4], %s2228
      %s2230 = sshll.u32 [#allocation3], 4
      %s2231 = int_to_ptr.vmem [resolvable:$true] %s2230
      %2236 = dma.vmem_to_hbm [thread:$0]  %s2231, 128, %s16, [#allocation4], 64, 64, 4
    $region69: #{spatial_decoder_forward.1} parent=1 // pred_fallthru
      _
    // Predicated region
    $region70: #{spatial_decoder_forward.1} parent=1 // pred_check
      _
    $region71: #{spatial_decoder_forward.1} parent=1 // pred_check_branch
      %2238 = sbr.rel (0) target = $region73
    $region72: #{spatial_decoder_forward.1} parent=1 // pred_region
      _
    $region73: #{spatial_decoder_forward.1} parent=1 // pred_fallthru
      _
    // Predicated region
    $region74: #{spatial_decoder_forward.1} parent=1 // pred_check
      _
    $region75: #{spatial_decoder_forward.1} parent=1 // pred_check_branch
      %2240 = sbr.rel (0) target = $region77
    $region76: #{spatial_decoder_forward.1} parent=1 // pred_region
      %2241 = dma.done [#allocation4], 128
    $region77: #{spatial_decoder_forward.1} parent=1 // pred_fallthru
      _
    // Predicated region
    $region78: #{spatial_decoder_forward.1} parent=1 // pred_check
      _
    $region79: #{spatial_decoder_forward.1} parent=1 // pred_check_branch
      %2243 = sbr.rel (0) target = $region81
    $region80: #{spatial_decoder_forward.1} parent=1 // pred_region
      _
    $region81: #{spatial_decoder_forward.1} parent=1 // pred_fallthru
      _
    %2244 = vsyncpa [#allocation4], 1

</llo_original>
